<compile_context>
chip_gen: v7x
topology: tpu7x:2x2x1
jax: 0.10.0
libtpu: 0.0.40
codegen_flags: <defaults>
</compile_context>

<pallas_src>
import itertools

import numpy as np
import jax
import jax.numpy as jnp
from jax.experimental import pallas as pl
from jax.experimental.pallas import tpu as pltpu


# ----------------------------------------------------------------------------
# Kernel: fused per-position LM scoring (all word lengths in one launch)
#   out[0, c] = log_softmax(W^T x[:, c] + b)[ tgt[0, c] ]   if tgt[0, c] >= 0
#             = 0                                            otherwise
# ----------------------------------------------------------------------------
def score_kernel(xT_ref, wt_ref, bt_ref, tgt_ref, out_ref):
    # xT_ref : [H, tile_n*T]   bf16   embedded tokens, transposed (lanes = word*pos)
    # wt_ref : [Vs, H]         bf16   output projection, transposed (V padded to 8)
    # bt_ref : [Vs, 1]         f32    output bias (-1e30 on pad rows)
    # tgt_ref: [1, tile_n*T]   i32    next-token targets, -1 where invalid
    # out_ref: [1, tile_n*T]   f32    per-position target log-probability
    Vs = wt_ref.shape[0]

    # logits on the MXU with f32 accumulation; everything after stays f32.
    logits = jnp.dot(wt_ref[...], xT_ref[...],
                     preferred_element_type=jnp.float32) + bt_ref[...]   # [Vs, nT]

    # stable logsumexp over the (8-sublane) vocab axis -- 16x narrower than the
    # old 128-lane-padded softmax.
    m = jnp.max(logits, axis=0, keepdims=True)                           # [1, nT]
    lse = m + jnp.log(jnp.sum(jnp.exp(logits - m), axis=0, keepdims=True))

    # target logit via sublane-iota compare + select + sum (no one-hot, no
    # full log-softmax).  tgt == -1 never matches the iota.
    tgt = tgt_ref[...]                                                   # [1, nT]
    iota_s = jax.lax.broadcasted_iota(jnp.int32, (Vs, 1), 0)             # [Vs, 1]
    sel = jnp.sum(jnp.where(iota_s == tgt, logits, 0.0),
                  axis=0, keepdims=True)                                 # [1, nT]

    # explicit invalid-position mask (mandatory now that lse is subtracted
    # once, after the select).
    out_ref[...] = jnp.where(tgt >= 0, sel - lse, 0.0)


def score_all_words(params, words, targets, tile_n=384):
    """Per-word log-probabilities for ALL word lengths in one launch.

    words   : np.int32 [N, T]  (BOS + letters + EOS, right-padded with 0)
    targets : np.int32 [N, T]  (next tokens; -1 where invalid)
    returns : jnp.float32 [N]
    """
    N, T = words.shape
    H = params["E"].shape[1]
    V = params["W"].shape[1]
    Vs = ((V + 7) // 8) * 8                        # vocab on sublanes, pad to 8

    # tile_n: multiple of 128 (lane-dense output, unmasked vst).  Default 384
    # gives ~3 grid steps at tau=3 on v5e/v6e; clamp so small tau doesn't
    # over-pad.  TODO(synk): on v7x pick tile_n so n_blocks == 2 for 2-TC balance.
    tile_n = int(min(tile_n, max(128, pl.cdiv(N, 128) * 128)))

    n_blocks = pl.cdiv(N, tile_n)
    Npad = n_blocks * tile_n
    nT = tile_n * T

    # Output projection transposed (vocab on sublanes); bf16 for the MXU.
    Wt_p = jnp.pad(params["W"].T, ((0, Vs - V), (0, 0))).astype(jnp.bfloat16)
    bt_p = jnp.pad(params["b"], (0, Vs - V),
                   constant_values=np.float32(-1e30)).reshape(Vs, 1)

    # Embedding lookup + transpose to [H, Npad*T] is XLA glue; bf16 halves the
    # streamed bytes (x dominates input traffic).
    emb = params["E"][jnp.asarray(words)]                        # [N, T, H]
    emb = jnp.pad(emb, ((0, Npad - N), (0, 0), (0, 0)))
    xT = jnp.transpose(emb, (2, 0, 1)).reshape(H, Npad * T).astype(jnp.bfloat16)
    tgt = jnp.pad(jnp.asarray(targets), ((0, Npad - N), (0, 0)),
                  constant_values=-1).reshape(1, Npad * T)

    cost = pl.CostEstimate(
        flops=int(2 * Npad * T * H * Vs),
        transcendentals=int(Npad * T * (Vs + 1)),
        bytes_accessed=int(2 * (H * Npad * T + Vs * H)
                           + 4 * (Vs + 2 * Npad * T)),
    )

    out = pl.pallas_call(
        score_kernel,
        out_shape=jax.ShapeDtypeStruct((1, Npad * T), jnp.float32),
        grid=(n_blocks,),
        in_specs=[
            pl.BlockSpec((H, nT), lambda i: (0, i)),      # xT: tile along lanes
            pl.BlockSpec((Vs, H), lambda i: (0, 0)),      # Wt: resident
            pl.BlockSpec((Vs, 1), lambda i: (0, 0)),      # b : resident
            pl.BlockSpec((1, nT), lambda i: (0, i)),      # targets
        ],
        out_specs=pl.BlockSpec((1, nT), lambda i: (0, i)),
        compiler_params=pltpu.CompilerParams(
            dimension_semantics=("parallel",)),
        cost_estimate=cost,
    )(xT, Wt_p, bt_p, tgt)

    # Per-word sum over T positions: tiny [Npad, T] reduction, left to XLA so
    # the kernel needs no lane<->sublane relayout.
    return out.reshape(Npad, T).sum(axis=1)[:N]


# ----------------------------------------------------------------------------
# Synthetic model + word enumeration glue
# ----------------------------------------------------------------------------
def init_model(vocab_size, hidden, key):
    k1, k2, k3 = jax.random.split(key, 3)
    return {
        "E": 0.1 * jax.random.normal(k1, (vocab_size, hidden), jnp.float32),
        "W": 0.1 * jax.random.normal(k2, (hidden, vocab_size), jnp.float32),
        "b": 0.1 * jax.random.normal(k3, (vocab_size,), jnp.float32),
    }


def build_all_words(tau, vocab_size):
    """Enumerate all words of length 0..2*tau, padded to a common T_pad."""
    n = vocab_size - 2
    T_pad = 2 * tau + 2                      # T folds into the lane axis; no 8-pad
    word_rows, tgt_rows, sizes = [], [], []
    for length in range(2 * tau + 1):
        if length == 0:
            letters = np.zeros((1, 0), dtype=np.int32)
        else:
            letters = np.array(
                list(itertools.product(range(n), repeat=length)),
                dtype=np.int32)
        Nl = letters.shape[0]
        bos = np.full((Nl, 1), vocab_size - 2, dtype=np.int32)
        eos = np.full((Nl, 1), vocab_size - 1, dtype=np.int32)
        w = np.concatenate([bos, letters, eos], axis=1)            # [Nl, L+2]
        T = length + 2
        w_pad = np.concatenate(
            [w, np.zeros((Nl, T_pad - T), dtype=np.int32)], axis=1)
        tg = np.full((Nl, T_pad), -1, dtype=np.int32)
        tg[:, :T - 1] = w[:, 1:]                                   # next tokens
        word_rows.append(w_pad)
        tgt_rows.append(tg)
        sizes.append(Nl)
    words = np.concatenate(word_rows, axis=0)
    targets = np.concatenate(tgt_rows, axis=0)
    return words, targets, sizes


def make_hankel(params, tau, stop_prob, vocab_size):
    # L_shape russian-roulette Hankel assembly; all Hankel tensors are scored
    # in a single fused Pallas launch.
    n = vocab_size - 2
    words, targets, sizes = build_all_words(tau, vocab_size)
    scores = score_all_words(params, words, targets)               # [sum(sizes)]

    offsets = np.concatenate([[0], np.cumsum(sizes)]).astype(np.int64)
    tensors = [scores[int(offsets[l]):int(offsets[l + 1])]
               for l in range(2 * tau + 1)]

    logH = tensors[0].reshape(1, 1)
    for t in range(1, tau + 1):
        shift = jnp.float32(t * np.log(1.0 - stop_prob))
        row_block = jnp.concatenate(
            [tensors[h].reshape(n ** t, -1) for h in range(t, 2 * t)],
            axis=1) - shift
        col_block = jnp.concatenate(
            [tensors[h].reshape(-1, n ** t) for h in range(t, 2 * t + 1)],
            axis=0) - shift
        logH = jnp.concatenate([logH, row_block], axis=0)
        logH = jnp.concatenate([logH, col_block], axis=1)
    return logH


def spectral_regularization(params, vocab_size, stop_prob=0.2,
                            hankel_size_cap=3):
    tau = int(min(np.random.geometric(stop_prob), hankel_size_cap))
    logH = make_hankel(params, tau, stop_prob, vocab_size)
    # exp(logH - max) on a <=40x40 (6.4 KB) matrix: a dedicated Pallas launch
    # is pure fixed overhead, so this stays in plain XLA (per perf review).
    expH = jnp.exp(logH - jnp.max(logH))
    # TODO(synk): nuclear norm needs an SVD — no Pallas equivalent, use jnp.linalg.svd.
    sing = jnp.linalg.svd(expH.astype(jnp.float32), compute_uv=False)
    return jnp.sum(sing), tau, logH.shape


if __name__ == "__main__":
    np.random.seed(0)                      # deterministic tau
    key = jax.random.PRNGKey(0)

    VOCAB_SIZE = 5                         # n_letters = 3, BOS=3, EOS=4
    HIDDEN = 32
    params = init_model(VOCAB_SIZE, HIDDEN, key)

    out, tau, hshape = spectral_regularization(
        params, VOCAB_SIZE, stop_prob=0.2, hankel_size_cap=3)
    out = jax.block_until_ready(out)
    assert np.isfinite(float(out)), "non-finite regularizer value"
    print("KERNEL_OK")
</pallas_src>

<mosaic_0001>
module attributes {stable_mosaic.version = 11 : i64} {
  func.func @score_kernel(%arg0: i32, %arg1: memref<32x3072xbf16, #tpu.memory_space<vmem>>, %arg2: memref<8x32xbf16, #tpu.memory_space<vmem>>, %arg3: memref<8x1xf32, #tpu.memory_space<vmem>>, %arg4: memref<1x3072xi32, #tpu.memory_space<vmem>>, %arg5: memref<1x3072xf32, #tpu.memory_space<vmem>>) attributes {dimension_semantics = [#tpu.dimension_semantics<parallel>], iteration_bounds = array<i64: 3>, scalar_prefetch = 0 : i64, scratch_operands = 0 : i64, tpu.core_type = #tpu.core_type<tc>, window_params = [{transform_indices = @transform_0, window_bounds = array<i64: 32, 3072>}, {pipeline_mode = #tpu.pipeline_mode<synchronous>, transform_indices = @transform_1, window_bounds = array<i64: 8, 32>}, {pipeline_mode = #tpu.pipeline_mode<synchronous>, transform_indices = @transform_2, window_bounds = array<i64: 8, 1>}, {transform_indices = @transform_3, window_bounds = array<i64: 1, 3072>}, {transform_indices = @transform_4, window_bounds = array<i64: 1, 3072>}]} {
    %c0 = arith.constant 0 : index
    %c0_0 = arith.constant 0 : index
    %0 = vector.load %arg2[%c0, %c0_0] : memref<8x32xbf16, #tpu.memory_space<vmem>>, vector<8x32xbf16>
    %c0_1 = arith.constant 0 : index
    %c0_2 = arith.constant 0 : index
    %1 = vector.load %arg1[%c0_1, %c0_2] : memref<32x3072xbf16, #tpu.memory_space<vmem>>, vector<32x3072xbf16>
    %cst = arith.constant dense<0.000000e+00> : vector<8x3072xf32>
    %2 = tpu.matmul %0, %1, %cst {dimension_numbers = #tpu.dot_dimension_numbers<[1], [0], [0], [1], [0, 0, 1, 1], [], []>} : vector<8x32xbf16>, vector<32x3072xbf16>, vector<8x3072xf32> -> vector<8x3072xf32>
    %c0_3 = arith.constant 0 : index
    %c0_4 = arith.constant 0 : index
    %3 = vector.load %arg3[%c0_3, %c0_4] : memref<8x1xf32, #tpu.memory_space<vmem>>, vector<8x1xf32>
    %4 = vector.broadcast %3 : vector<8x1xf32> to vector<8x3072xf32>
    %5 = arith.addf %2, %4 : vector<8x3072xf32>
    %cst_5 = arith.constant dense<0xFF800000> : vector<3072xf32>
    %6 = vector.multi_reduction <maximumf>, %5, %cst_5 [0] : vector<8x3072xf32> to vector<3072xf32>
    %7 = vector.shape_cast %6 : vector<3072xf32> to vector<1x3072xf32>
    %8 = vector.broadcast %7 : vector<1x3072xf32> to vector<8x3072xf32>
    %9 = arith.subf %5, %8 : vector<8x3072xf32>
    %10 = math.exp %9 : vector<8x3072xf32>
    %cst_6 = arith.constant dense<0.000000e+00> : vector<3072xf32>
    %11 = vector.multi_reduction <add>, %10, %cst_6 [0] : vector<8x3072xf32> to vector<3072xf32>
    %12 = vector.shape_cast %11 : vector<3072xf32> to vector<1x3072xf32>
    %13 = math.log %12 : vector<1x3072xf32>
    %14 = arith.addf %7, %13 : vector<1x3072xf32>
    %c0_7 = arith.constant 0 : index
    %c0_8 = arith.constant 0 : index
    %15 = vector.load %arg4[%c0_7, %c0_8] : memref<1x3072xi32, #tpu.memory_space<vmem>>, vector<1x3072xi32>
    %16 = tpu.iota {dimensions = array<i32: 0>} : vector<8x1xi32>
    %17 = vector.broadcast %16 : vector<8x1xi32> to vector<8x3072xi32>
    %18 = vector.broadcast %15 : vector<1x3072xi32> to vector<8x3072xi32>
    %19 = arith.cmpi eq, %17, %18 : vector<8x3072xi32>
    %cst_9 = arith.constant 0.000000e+00 : f32
    %20 = vector.broadcast %cst_9 : f32 to vector<8x3072xf32>
    %21 = arith.select %19, %5, %20 : vector<8x3072xi1>, vector<8x3072xf32>
    %cst_10 = arith.constant dense<0.000000e+00> : vector<3072xf32>
    %22 = vector.multi_reduction <add>, %21, %cst_10 [0] : vector<8x3072xf32> to vector<3072xf32>
    %23 = vector.shape_cast %22 : vector<3072xf32> to vector<1x3072xf32>
    %c0_i32 = arith.constant 0 : i32
    %24 = vector.broadcast %c0_i32 : i32 to vector<1x3072xi32>
    %25 = arith.cmpi sge, %15, %24 : vector<1x3072xi32>
    %26 = arith.subf %23, %14 : vector<1x3072xf32>
    %cst_11 = arith.constant 0.000000e+00 : f32
    %27 = vector.broadcast %cst_11 : f32 to vector<1x3072xf32>
    %28 = arith.select %25, %26, %27 : vector<1x3072xi1>, vector<1x3072xf32>
    %c0_12 = arith.constant 0 : index
    %c0_13 = arith.constant 0 : index
    %29 = vector.load %arg5[%c0_12, %c0_13] : memref<1x3072xf32, #tpu.memory_space<vmem>>, vector<1x3072xf32>
    tpu.vector_store %arg5[%c0_12, %c0_13], %28 {strides = array<i32>} : memref<1x3072xf32, #tpu.memory_space<vmem>>, vector<1x3072xf32>,
    return
  }
  func.func @transform_0(%arg0: i32) -> (i32, i32) {
    %c0_i32 = arith.constant 0 : i32
    %c0_i32_0 = arith.constant 0 : i32
    return %c0_i32, %arg0 : i32, i32
  }
  func.func @transform_1(%arg0: i32) -> (i32, i32) {
    %c0_i32 = arith.constant 0 : i32
    %c0_i32_0 = arith.constant 0 : i32
    %c0_i32_1 = arith.constant 0 : i32
    return %c0_i32, %c0_i32_0 : i32, i32
  }
  func.func @transform_2(%arg0: i32) -> (i32, i32) {
    %c0_i32 = arith.constant 0 : i32
    %c0_i32_0 = arith.constant 0 : i32
    %c0_i32_1 = arith.constant 0 : i32
    return %c0_i32, %c0_i32_0 : i32, i32
  }
  func.func @transform_3(%arg0: i32) -> (i32, i32) {
    %c0_i32 = arith.constant 0 : i32
    %c0_i32_0 = arith.constant 0 : i32
    return %c0_i32, %arg0 : i32, i32
  }
  func.func @transform_4(%arg0: i32) -> (i32, i32) {
    %c0_i32 = arith.constant 0 : i32
    %c0_i32_0 = arith.constant 0 : i32
    return %c0_i32, %arg0 : i32, i32
  }
}

</mosaic_0001>

<llo_original>
// kernel: tpu_custom_call.1
$region0: #{tpu_custom_call.1}
  #allocation0 [shape = 'u32[]', space=smem, size = 0x4, offset = 0x4, fixed_abs, tag = 'smem constant byte address 0x4 - core index']
  #allocation1 [shape = 'u32[144,128]{1,0:T(1,128)}', space=vmem, size = 0x12000, scoped, tag = 'internal scratch']
  %s0 = inlined_call_operand.hbm [shape: bf16[32,9216], index: 0, kind: input, shape index: {}]
  %s1 = inlined_call_operand.vmem [shape: bf16[8,32], index: 1, kind: input, shape index: {}]
  %s2 = inlined_call_operand.vmem [shape: f32[8,1], index: 2, kind: input, shape index: {}]
  %s3 = inlined_call_operand.hbm [shape: s32[1,9216], index: 3, kind: input, shape index: {}]
  %s4 = inlined_call_operand.hbm [shape: f32[1,9216], index: 4, kind: output, shape index: {}]
  %s5 = sld [smem:[#allocation0]]
  $region57: #{tpu_custom_call.1} parent=0
    _
  %s7 = ssub.s32 1, %s5
  %s8 = scalar_select 0, %s7, %s5
  $region1: #{tpu_custom_call.1} parent=0
    #allocation2 [shape = 'u8[393216]{0}', space=vmem, size = 0x60000, scoped, tag = 'input window, operand 0']
    #allocation3 [shape = 's32[2]{0}', space=sflag, size = 0x8, scoped, tag = 'scoped memory for tpu_custom_call.1']
    #allocation4 [shape = 's32[2]{0}', space=sflag, size = 0x8, scoped, tag = 'scoped memory for tpu_custom_call.1']
    #allocation5 [shape = 'u8[24576]{0}', space=vmem, size = 0x6000, scoped, tag = 'input window, operand 3']
    #allocation6 [shape = 's32[2]{0}', space=sflag, size = 0x8, scoped, tag = 'scoped memory for tpu_custom_call.1']
    #allocation7 [shape = 'u8[24576]{0}', space=vmem, size = 0x6000, scoped, tag = 'output window, operand 0']
    %9 = vsyncpa [#allocation3], 0
    %s10 = scalar_lea.sflag [#allocation3], 1
    %11 = vsyncpa %s10, 0
    %12 = vsyncpa [#allocation6], 0
    %s13 = scalar_lea.sflag [#allocation6], 1
    %14 = vsyncpa %s13, 0
    %15 = vsyncpa [#allocation4], 0
    %s16 = scalar_lea.sflag [#allocation4], 1
    %17 = vsyncpa %s16, 0
    loop: start=0, step=1, limit=5
    $region2: #{tpu_custom_call.1} parent=1 // loop_pre_header
      _
    $region3: #{tpu_custom_call.1} parent=1 // loop_header
      %s19 = sphi 0, %s23
      %p20 = scmp.ge.s32.totalorder %s19, 5
      %s29 = sphi 0, %s31
      %s32 = sphi 0, %s29
      %s33 = sphi 0, %s32
      %s49 = sphi 0, %s33
      %s53 = sphi 0, %s53
      %s55 = sphi 0, %s53
      %s56 = sphi 0, %s55
      %s70 = sphi 0, %s56
      %s74 = sphi 0, %s74
      %s76 = sphi 0, %s74
      %s77 = sphi 0, %s76
      %s91 = sphi 0, %s77
      %s97 = sphi 0, %s99
      %s100 = sphi 0, %s97
      %s101 = sphi 0, %s100
      %s117 = sphi 0, %s101
      %s123 = sphi 0, %s125
      %s126 = sphi 0, %s123
      %s127 = sphi 0, %s126
      %s143 = sphi 0, %s127
    $region4: #{tpu_custom_call.1} parent=1 // loop_header_branch
      %22 = sbr.rel (%p20) target = $region8
    $region5: #{tpu_custom_call.1} parent=1 // loop_body
      %s24 = ssub.s32 %s19, 1
      %s25 = ssub.s32 %s19, 2
      %s26 = sadd.s32 %s19, 1
      %s27 = ssub.s32 %s19, %s26
      %p28 = scmp.eq.s32.totalorder %s27, 0
      %s30 = sadd.s32 %s29, 1
      %s31 = scalar_select %p28, %s29, %s30
      %p34 = pneg %p28
      %p35 = scmp.eq.s32.totalorder %s19, 2
      %p36 = por %p34, %p35
      %p37 = scmp.ne.s32.totalorder %s29, %s32
      %p38 = scmp.eq.s32.totalorder %s19, 0
      %p39 = por %p37, %p38
      %p40 = scmp.ne.s32.totalorder %s29, %s32
      %p41 = scmp.eq.s32.totalorder %s24, 2
      %p42 = por %p40, %p41
      %p43 = scmp.ne.s32.totalorder %s32, %s33
      %p44 = scmp.eq.s32.totalorder %s24, 0
      %p45 = por %p43, %p44
      %p46 = scmp.ne.s32.totalorder %s32, %s33
      %p47 = scmp.eq.s32.totalorder %s25, 2
      %p48 = por %p46, %p47
      %p50 = scmp.ne.s32.totalorder %s33, %s49
      %p51 = scmp.eq.s32.totalorder %s25, 0
      %p52 = por %p50, %p51
      %s54 = sadd.s32 %s53, 1
      %p57 = scmp.eq.s32.totalorder %s19, 2
      %p58 = scmp.ne.s32.totalorder %s53, %s55
      %p59 = scmp.eq.s32.totalorder %s19, 0
      %p60 = por %p58, %p59
      %p61 = scmp.ne.s32.totalorder %s53, %s55
      %p62 = scmp.eq.s32.totalorder %s24, 2
      %p63 = por %p61, %p62
      %p64 = scmp.ne.s32.totalorder %s55, %s56
      %p65 = scmp.eq.s32.totalorder %s24, 0
      %p66 = por %p64, %p65
      %p67 = scmp.ne.s32.totalorder %s55, %s56
      %p68 = scmp.eq.s32.totalorder %s25, 2
      %p69 = por %p67, %p68
      %p71 = scmp.ne.s32.totalorder %s56, %s70
      %p72 = scmp.eq.s32.totalorder %s25, 0
      %p73 = por %p71, %p72
      %s75 = sadd.s32 %s74, 1
      %p78 = scmp.eq.s32.totalorder %s19, 2
      %p79 = scmp.ne.s32.totalorder %s74, %s76
      %p80 = scmp.eq.s32.totalorder %s19, 0
      %p81 = por %p79, %p80
      %p82 = scmp.ne.s32.totalorder %s74, %s76
      %p83 = scmp.eq.s32.totalorder %s24, 2
      %p84 = por %p82, %p83
      %p85 = scmp.ne.s32.totalorder %s76, %s77
      %p86 = scmp.eq.s32.totalorder %s24, 0
      %p87 = por %p85, %p86
      %p88 = scmp.ne.s32.totalorder %s76, %s77
      %p89 = scmp.eq.s32.totalorder %s25, 2
      %p90 = por %p88, %p89
      %p92 = scmp.ne.s32.totalorder %s77, %s91
      %p93 = scmp.eq.s32.totalorder %s25, 0
      %p94 = por %p92, %p93
      %s95 = ssub.s32 %s19, %s26
      %p96 = scmp.eq.s32.totalorder %s95, 0
      %s98 = sadd.s32 %s97, 1
      %s99 = scalar_select %p96, %s97, %s98
      %p102 = pneg %p96
      %p103 = scmp.eq.s32.totalorder %s19, 2
      %p104 = por %p102, %p103
      %p105 = scmp.ne.s32.totalorder %s97, %s100
      %p106 = scmp.eq.s32.totalorder %s19, 0
      %p107 = por %p105, %p106
      %p108 = scmp.ne.s32.totalorder %s97, %s100
      %p109 = scmp.eq.s32.totalorder %s24, 2
      %p110 = por %p108, %p109
      %p111 = scmp.ne.s32.totalorder %s100, %s101
      %p112 = scmp.eq.s32.totalorder %s24, 0
      %p113 = por %p111, %p112
      %p114 = scmp.ne.s32.totalorder %s100, %s101
      %p115 = scmp.eq.s32.totalorder %s25, 2
      %p116 = por %p114, %p115
      %p118 = scmp.ne.s32.totalorder %s101, %s117
      %p119 = scmp.eq.s32.totalorder %s25, 0
      %p120 = por %p118, %p119
      %s121 = ssub.s32 %s19, %s26
      %p122 = scmp.eq.s32.totalorder %s121, 0
      %s124 = sadd.s32 %s123, 1
      %s125 = scalar_select %p122, %s123, %s124
      %p128 = pneg %p122
      %p129 = scmp.eq.s32.totalorder %s19, 2
      %p130 = por %p128, %p129
      %p131 = scmp.ne.s32.totalorder %s123, %s126
      %p132 = scmp.eq.s32.totalorder %s19, 0
      %p133 = por %p131, %p132
      %p134 = scmp.ne.s32.totalorder %s123, %s126
      %p135 = scmp.eq.s32.totalorder %s24, 2
      %p136 = por %p134, %p135
      %p137 = scmp.ne.s32.totalorder %s126, %s127
      %p138 = scmp.eq.s32.totalorder %s24, 0
      %p139 = por %p137, %p138
      %p140 = scmp.ne.s32.totalorder %s126, %s127
      %p141 = scmp.eq.s32.totalorder %s25, 2
      %p142 = por %p140, %p141
      %p144 = scmp.ne.s32.totalorder %s127, %s143
      %p145 = scmp.eq.s32.totalorder %s25, 0
      %p146 = por %p144, %p145
      %p147 = scmp.le.s32.totalorder 1, %s19
      %p148 = scmp.lt.s32.totalorder %s19, 4
      %p149 = pnand %p147, %p148
      %p150 = pneg %p149
      // Predicated region
      $region9: #{tpu_custom_call.1} parent=5 // pred_check
        _
      $region10: #{tpu_custom_call.1} parent=5 // pred_check_branch
        %152 = sbr.rel (%p149) target = $region12
      $region11: #{tpu_custom_call.1} parent=5 // pred_region
        %s153 = ssub.s32 %s19, 1
        // Predicated region
        $region13: #{tpu_custom_call.1} parent=11 // pred_check
          %p154 = pneg %p66
        $region14: #{tpu_custom_call.1} parent=11 // pred_check_branch
          %156 = sbr.rel (%p154) target = $region16
        $region15: #{tpu_custom_call.1} parent=11 // pred_region
          _
        $region16: #{tpu_custom_call.1} parent=11 // pred_fallthru
          _
        // Predicated region
        $region17: #{tpu_custom_call.1} parent=11 // pred_check
          %p157 = pneg %p87
        $region18: #{tpu_custom_call.1} parent=11 // pred_check_branch
          %159 = sbr.rel (%p157) target = $region20
        $region19: #{tpu_custom_call.1} parent=11 // pred_region
          _
        $region20: #{tpu_custom_call.1} parent=11 // pred_fallthru
          _
      $region12: #{tpu_custom_call.1} parent=5 // pred_fallthru
        _
      %p160 = scmp.lt.s32.totalorder %s19, 3
      // Predicated region
      $region21: #{tpu_custom_call.1} parent=5 // pred_check
        %p161 = pneg %p160
      $region22: #{tpu_custom_call.1} parent=5 // pred_check_branch
        %163 = sbr.rel (%p161) target = $region24
      $region23: #{tpu_custom_call.1} parent=5 // pred_region
        // Predicated region
        $region25: #{tpu_custom_call.1} parent=23 // pred_check
          %p164 = pneg %p39
        $region26: #{tpu_custom_call.1} parent=23 // pred_check_branch
          %166 = sbr.rel (%p164) target = $region28
        $region27: #{tpu_custom_call.1} parent=23 // pred_region
          %s167 = sand.u32 %s29, 1
          %s168 = scalar_lea.sflag [#allocation3], %s167
          %s169 = sand.u32 %s29, 1
          %s170 = smul.addr %s169, 384
          %s171 = scalar_lea.vmem [#allocation2], %s170
          %s172 = smul.u32 24, %s19
          %s174 = ssub.s32 6144, 6144
          %175 = vsyncadd %s168, %s174
          %s176 = smul.addr %s172, 64
          %s177 = scalar_lea.hbm %s0, %s176
          %s178 = sshll.u32 %s171, 4
          %s179 = int_to_ptr.vmem [resolvable:$true] %s178
          %184 = dma.hbm_to_vmem [thread:$0]  %s177, 6144, %s179, %s168, 4608, 1536, 96
        $region28: #{tpu_custom_call.1} parent=23 // pred_fallthru
          _
        // Predicated region
        $region29: #{tpu_custom_call.1} parent=23 // pred_check
          %p185 = pneg %p107
        $region30: #{tpu_custom_call.1} parent=23 // pred_check_branch
          %187 = sbr.rel (%p185) target = $region32
        $region31: #{tpu_custom_call.1} parent=23 // pred_region
          %s188 = sand.u32 %s97, 1
          %s189 = scalar_lea.sflag [#allocation6], %s188
          %s190 = sand.u32 %s97, 1
          %s191 = smul.addr %s190, 24
          %s192 = scalar_lea.vmem [#allocation5], %s191
          %s193 = smul.u32 24, %s19
          %s195 = ssub.s32 384, 384
          %196 = vsyncadd %s189, %s195
          %s197 = smul.addr %s193, 16
          %s198 = scalar_lea.hbm %s3, %s197
          %s200 = sshll.u32 %s192, 4
          %s201 = int_to_ptr.vmem [resolvable:$true] %s200
          %203 = dma.hbm_to_vmem [thread:$0]  %s198, 384, %s201, %s189
        $region32: #{tpu_custom_call.1} parent=23 // pred_fallthru
          _
      $region24: #{tpu_custom_call.1} parent=5 // pred_fallthru
        _
      %p204 = scmp.le.s32.totalorder 1, %s19
      %p205 = scmp.lt.s32.totalorder %s19, 4
      %p206 = pnand %p204, %p205
      %p207 = pneg %p206
      // Predicated region
      $region33: #{tpu_custom_call.1} parent=5 // pred_check
        _
      $region34: #{tpu_custom_call.1} parent=5 // pred_check_branch
        %209 = sbr.rel (%p206) target = $region36
      $region35: #{tpu_custom_call.1} parent=5 // pred_region
        %s210 = ssub.s32 %s19, 1
        %s211 = sand.u32 %s32, 1
        %s212 = scalar_lea.sflag [#allocation3], %s211
        %s213 = sand.u32 %s32, 1
        %s214 = smul.addr %s213, 384
        %s215 = scalar_lea.vmem [#allocation2], %s214
        // Predicated region
        $region37: #{tpu_custom_call.1} parent=35 // pred_check
          %p216 = pneg %p45
        $region38: #{tpu_custom_call.1} parent=35 // pred_check_branch
          %218 = sbr.rel (%p216) target = $region40
        $region39: #{tpu_custom_call.1} parent=35 // pred_region
          %219 = dma.done %s212, 6144
        $region40: #{tpu_custom_call.1} parent=35 // pred_fallthru
          _
        %s220 = sand.u32 %s100, 1
        %s221 = scalar_lea.sflag [#allocation6], %s220
        %s222 = sand.u32 %s100, 1
        %s223 = smul.addr %s222, 24
        %s224 = scalar_lea.vmem [#allocation5], %s223
        // Predicated region
        $region41: #{tpu_custom_call.1} parent=35 // pred_check
          %p225 = pneg %p113
        $region42: #{tpu_custom_call.1} parent=35 // pred_check_branch
          %227 = sbr.rel (%p225) target = $region44
        $region43: #{tpu_custom_call.1} parent=35 // pred_region
          %228 = dma.done %s221, 384
        $region44: #{tpu_custom_call.1} parent=35 // pred_fallthru
          _
        %s229 = sand.u32 %s32, 1
        %s230 = scalar_lea.sflag [#allocation3], %s229
        %s231 = sand.u32 %s32, 1
        %s232 = smul.addr %s231, 384
        %s233 = scalar_lea.vmem [#allocation2], %s232
        %p234 = pneg %p45
        %p235 = pneg %p42
        %p236 = pneg %p66
        %p237 = pneg %p63
        %p238 = pneg %p87
        %p239 = pneg %p84
        %s240 = sand.u32 %s100, 1
        %s241 = scalar_lea.sflag [#allocation6], %s240
        %s242 = sand.u32 %s100, 1
        %s243 = smul.addr %s242, 24
        %s244 = scalar_lea.vmem [#allocation5], %s243
        %p245 = pneg %p113
        %p246 = pneg %p110
        %p247 = pneg %p139
        %p248 = pneg %p136
        %s249 = sand.u32 %s126, 1
        %s250 = scalar_lea.sflag [#allocation4], %s249
        %s251 = sand.u32 %s126, 1
        %s252 = smul.addr %s251, 24
        %s253 = scalar_lea.vmem [#allocation7], %s252
        %s254 = smul.u32 24, %s24
        %s255 = smul.u32 24, %s24
        %s256 = smul.u32 24, %s24
        %v258 = vld [vmem:[%s1] sm:$0xf]
        %v259 = vld [vmem:[%s215] sm:$0xff]
        %v260 = vld [vmem:[%s215 + $0x8] sm:$0xff]
        %v261 = vld [vmem:[%s215 + $0x10] sm:$0xff]
        %v262 = vld [vmem:[%s215 + $0x18] sm:$0xff]
        %v263 = vld [vmem:[%s215 + $0x20] sm:$0xff]
        %v264 = vld [vmem:[%s215 + $0x28] sm:$0xff]
        %v265 = vld [vmem:[%s215 + $0x30] sm:$0xff]
        %v266 = vld [vmem:[%s215 + $0x38] sm:$0xff]
        %v267 = vld [vmem:[%s215 + $0x40] sm:$0xff]
        %v268 = vld [vmem:[%s215 + $0x48] sm:$0xff]
        %v269 = vld [vmem:[%s215 + $0x50] sm:$0xff]
        %v270 = vld [vmem:[%s215 + $0x58] sm:$0xff]
        %v271 = vld [vmem:[%s215 + $0x60] sm:$0xff]
        %v272 = vld [vmem:[%s215 + $0x68] sm:$0xff]
        %v273 = vld [vmem:[%s215 + $0x70] sm:$0xff]
        %v274 = vld [vmem:[%s215 + $0x78] sm:$0xff]
        %v275 = vld [vmem:[%s215 + $0x80] sm:$0xff]
        %v276 = vld [vmem:[%s215 + $0x88] sm:$0xff]
        %v277 = vld [vmem:[%s215 + $0x90] sm:$0xff]
        %v278 = vld [vmem:[%s215 + $0x98] sm:$0xff]
        %v279 = vld [vmem:[%s215 + $0xa0] sm:$0xff]
        %v280 = vld [vmem:[%s215 + $0xa8] sm:$0xff]
        %v281 = vld [vmem:[%s215 + $0xb0] sm:$0xff]
        %v282 = vld [vmem:[%s215 + $0xb8] sm:$0xff]
        %v283 = vld [vmem:[%s215 + $0xc0] sm:$0xff]
        %v284 = vld [vmem:[%s215 + $0xc8] sm:$0xff]
        %v285 = vld [vmem:[%s215 + $0xd0] sm:$0xff]
        %v286 = vld [vmem:[%s215 + $0xd8] sm:$0xff]
        %v287 = vld [vmem:[%s215 + $0xe0] sm:$0xff]
        %v288 = vld [vmem:[%s215 + $0xe8] sm:$0xff]
        %v289 = vld [vmem:[%s215 + $0xf0] sm:$0xff]
        %v290 = vld [vmem:[%s215 + $0xf8] sm:$0xff]
        %v291 = vld [vmem:[%s215 + $0x100] sm:$0xff]
        %v292 = vld [vmem:[%s215 + $0x108] sm:$0xff]
        %v293 = vld [vmem:[%s215 + $0x110] sm:$0xff]
        %v294 = vld [vmem:[%s215 + $0x118] sm:$0xff]
        %v295 = vld [vmem:[%s215 + $0x120] sm:$0xff]
        %v296 = vld [vmem:[%s215 + $0x128] sm:$0xff]
        %v297 = vld [vmem:[%s215 + $0x130] sm:$0xff]
        %v298 = vld [vmem:[%s215 + $0x138] sm:$0xff]
        %v299 = vld [vmem:[%s215 + $0x140] sm:$0xff]
        %v300 = vld [vmem:[%s215 + $0x148] sm:$0xff]
        %v301 = vld [vmem:[%s215 + $0x150] sm:$0xff]
        %v302 = vld [vmem:[%s215 + $0x158] sm:$0xff]
        %v303 = vld [vmem:[%s215 + $0x160] sm:$0xff]
        %v304 = vld [vmem:[%s215 + $0x168] sm:$0xff]
        %v305 = vld [vmem:[%s215 + $0x170] sm:$0xff]
        %v306 = vld [vmem:[%s215 + $0x178] sm:$0xff]
        %v307 = vld [vmem:[%s2] sm:$0xff]
        %309 = vset.pattern.permute.xlu0 0
        %310 = vperm.xlu0 %309, %v307
        %v311 = vpop.permute.xlu0 %310
        %v361 = vunpack.c.l.b16 %v259
        %v362 = vunpack.c.h.b16 %v259
        %v363 = vunpack.c.l.b16 %v260
        %v364 = vunpack.c.h.b16 %v260
        %v365 = vunpack.c.l.b16 %v261
        %v366 = vunpack.c.h.b16 %v261
        %v367 = vunpack.c.l.b16 %v262
        %v368 = vunpack.c.h.b16 %v262
        %v369 = vunpack.c.l.b16 %v263
        %v370 = vunpack.c.h.b16 %v263
        %v371 = vunpack.c.l.b16 %v264
        %v372 = vunpack.c.h.b16 %v264
        %v373 = vunpack.c.l.b16 %v265
        %v374 = vunpack.c.h.b16 %v265
        %v375 = vunpack.c.l.b16 %v266
        %v376 = vunpack.c.h.b16 %v266
        %v377 = vunpack.c.l.b16 %v267
        %v378 = vunpack.c.h.b16 %v267
        %v379 = vunpack.c.l.b16 %v268
        %v380 = vunpack.c.h.b16 %v268
        %v381 = vunpack.c.l.b16 %v269
        %v382 = vunpack.c.h.b16 %v269
        %v383 = vunpack.c.l.b16 %v270
        %v384 = vunpack.c.h.b16 %v270
        %v385 = vunpack.c.l.b16 %v271
        %v386 = vunpack.c.h.b16 %v271
        %v387 = vunpack.c.l.b16 %v272
        %v388 = vunpack.c.h.b16 %v272
        %v389 = vunpack.c.l.b16 %v273
        %v390 = vunpack.c.h.b16 %v273
        %v391 = vunpack.c.l.b16 %v274
        %v392 = vunpack.c.h.b16 %v274
        %v393 = vunpack.c.l.b16 %v275
        %v394 = vunpack.c.h.b16 %v275
        %v395 = vunpack.c.l.b16 %v276
        %v396 = vunpack.c.h.b16 %v276
        %v397 = vunpack.c.l.b16 %v277
        %v398 = vunpack.c.h.b16 %v277
        %v399 = vunpack.c.l.b16 %v278
        %v400 = vunpack.c.h.b16 %v278
        %v401 = vunpack.c.l.b16 %v279
        %v402 = vunpack.c.h.b16 %v279
        %v403 = vunpack.c.l.b16 %v280
        %v404 = vunpack.c.h.b16 %v280
        %v405 = vunpack.c.l.b16 %v281
        %v406 = vunpack.c.h.b16 %v281
        %v407 = vunpack.c.l.b16 %v282
        %v408 = vunpack.c.h.b16 %v282
        %v409 = vunpack.c.l.b16 %v283
        %v410 = vunpack.c.h.b16 %v283
        %v411 = vunpack.c.l.b16 %v284
        %v412 = vunpack.c.h.b16 %v284
        %v413 = vunpack.c.l.b16 %v285
        %v414 = vunpack.c.h.b16 %v285
        %v415 = vunpack.c.l.b16 %v286
        %v416 = vunpack.c.h.b16 %v286
        %v417 = vunpack.c.l.b16 %v287
        %v418 = vunpack.c.h.b16 %v287
        %v419 = vunpack.c.l.b16 %v288
        %v420 = vunpack.c.h.b16 %v288
        %v421 = vunpack.c.l.b16 %v289
        %v422 = vunpack.c.h.b16 %v289
        %v423 = vunpack.c.l.b16 %v290
        %v424 = vunpack.c.h.b16 %v290
        %v425 = vunpack.c.l.b16 %v291
        %v426 = vunpack.c.h.b16 %v291
        %v427 = vunpack.c.l.b16 %v292
        %v428 = vunpack.c.h.b16 %v292
        %v429 = vunpack.c.l.b16 %v293
        %v430 = vunpack.c.h.b16 %v293
        %v431 = vunpack.c.l.b16 %v294
        %v432 = vunpack.c.h.b16 %v294
        %v433 = vunpack.c.l.b16 %v295
        %v434 = vunpack.c.h.b16 %v295
        %v435 = vunpack.c.l.b16 %v296
        %v436 = vunpack.c.h.b16 %v296
        %v437 = vunpack.c.l.b16 %v297
        %v438 = vunpack.c.h.b16 %v297
        %v439 = vunpack.c.l.b16 %v298
        %v440 = vunpack.c.h.b16 %v298
        %v441 = vunpack.c.l.b16 %v299
        %v442 = vunpack.c.h.b16 %v299
        %v443 = vunpack.c.l.b16 %v300
        %v444 = vunpack.c.h.b16 %v300
        %v445 = vunpack.c.l.b16 %v301
        %v446 = vunpack.c.h.b16 %v301
        %v447 = vunpack.c.l.b16 %v302
        %v448 = vunpack.c.h.b16 %v302
        %v449 = vunpack.c.l.b16 %v303
        %v450 = vunpack.c.h.b16 %v303
        %v451 = vunpack.c.l.b16 %v304
        %v452 = vunpack.c.h.b16 %v304
        %v453 = vunpack.c.l.b16 %v305
        %v454 = vunpack.c.h.b16 %v305
        %v455 = vunpack.c.l.b16 %v306
        %v456 = vunpack.c.h.b16 %v306
        %v457 = vpack.c.b16 %v385, %v361
        %v458 = vpack.c.b16 %v386, %v362
        %v459 = vpack.c.b16 %v387, %v363
        %v460 = vpack.c.b16 %v388, %v364
        %v461 = vpack.c.b16 %v389, %v365
        %v462 = vpack.c.b16 %v390, %v366
        %v463 = vpack.c.b16 %v391, %v367
        %v464 = vpack.c.b16 %v392, %v368
        %v465 = vpack.c.b16 %v393, %v369
        %v466 = vpack.c.b16 %v394, %v370
        %v467 = vpack.c.b16 %v395, %v371
        %v468 = vpack.c.b16 %v396, %v372
        %v469 = vpack.c.b16 %v397, %v373
        %v470 = vpack.c.b16 %v398, %v374
        %v471 = vpack.c.b16 %v399, %v375
        %v472 = vpack.c.b16 %v400, %v376
        %v473 = vpack.c.b16 %v401, %v377
        %v474 = vpack.c.b16 %v402, %v378
        %v475 = vpack.c.b16 %v403, %v379
        %v476 = vpack.c.b16 %v404, %v380
        %v477 = vpack.c.b16 %v405, %v381
        %v478 = vpack.c.b16 %v406, %v382
        %v479 = vpack.c.b16 %v407, %v383
        %v480 = vpack.c.b16 %v408, %v384
        %v481 = vpack.c.b16 %v433, %v409
        %v482 = vpack.c.b16 %v434, %v410
        %v483 = vpack.c.b16 %v435, %v411
        %v484 = vpack.c.b16 %v436, %v412
        %v485 = vpack.c.b16 %v437, %v413
        %v486 = vpack.c.b16 %v438, %v414
        %v487 = vpack.c.b16 %v439, %v415
        %v488 = vpack.c.b16 %v440, %v416
        %v489 = vpack.c.b16 %v441, %v417
        %v490 = vpack.c.b16 %v442, %v418
        %v491 = vpack.c.b16 %v443, %v419
        %v492 = vpack.c.b16 %v444, %v420
        %v493 = vpack.c.b16 %v445, %v421
        %v494 = vpack.c.b16 %v446, %v422
        %v495 = vpack.c.b16 %v447, %v423
        %v496 = vpack.c.b16 %v448, %v424
        %v497 = vpack.c.b16 %v449, %v425
        %v498 = vpack.c.b16 %v450, %v426
        %v499 = vpack.c.b16 %v451, %v427
        %v500 = vpack.c.b16 %v452, %v428
        %v501 = vpack.c.b16 %v453, %v429
        %v502 = vpack.c.b16 %v454, %v430
        %v503 = vpack.c.b16 %v455, %v431
        %v504 = vpack.c.b16 %v456, %v432
        %vm553 = vcmask 261120
        %v555 = vsel %vm553, %v258, 0
        %557 = vmatprep.subr.bf16.mxu0 %v458
        %558 = vmatpush1.bf16.msra.mxu0 %v457
        %559 = vmatprep.subr.bf16.mxu0 %v482
        %560 = vmatpush1.bf16.msra.mxu0 %v481
        %561 = vmatprep.subr.bf16.mxu0 0
        %562 = vmatpush1.bf16.msra.mxu0 0
        %563 = vmatprep.subr.bf16.mxu0 0
        %564 = vmatpush1.bf16.msra.mxu0 0
        %565 = vmatprep.subr.bf16.mxu0 0
        %566 = vmatpush1.bf16.msra.mxu0 0
        %567 = vmatprep.subr.bf16.mxu0 0
        %568 = vmatpush1.bf16.msra.mxu0 0
        %569 = vmatprep.subr.bf16.mxu0 0
        %570 = vmatpush1.bf16.msra.mxu0 0
        %571 = vmatprep.subr.bf16.mxu0 0
        %572 = vmatpush1.bf16.msra.mxu0 0
        %573 = vmatprep.subr.bf16.mxu0 0
        %574 = vmatpush1.bf16.msra.mxu0 0
        %575 = vmatprep.subr.bf16.mxu0 0
        %576 = vmatpush1.bf16.msra.mxu0 0
        %577 = vmatprep.subr.bf16.mxu0 0
        %578 = vmatpush1.bf16.msra.mxu0 0
        %579 = vmatprep.subr.bf16.mxu0 0
        %580 = vmatpush1.bf16.msra.mxu0 0
        %581 = vmatprep.subr.bf16.mxu0 0
        %582 = vmatpush1.bf16.msra.mxu0 0
        %583 = vmatprep.subr.bf16.mxu0 0
        %584 = vmatpush1.bf16.msra.mxu0 0
        %585 = vmatprep.subr.bf16.mxu0 0
        %586 = vmatpush1.bf16.msra.mxu0 0
        %587 = vmatprep.subr.bf16.mxu0 0
        %588 = vmatpush1.bf16.msra.mxu0 0
        %589 = vmatprep.mubr.bf16.mxu0 0
        %590 = vmatmul.mubr.bf16.gmra.mrb[0].mxu0 %v555
        %v591 = vpop.f32.mrb[0].mxu0
        %v592 = vadd.f32 %v311, %v591
        %v593 = vpop.f32.mrb[0].mxu0
        %v594 = vadd.f32 %v311, %v593
        %v595 = vpop.f32.mrb[0].mxu0
        %v596 = vpop.f32.mrb[0].mxu0
        %597 = vdwg.mxu0
        %598 = vmatprep.subr.bf16.mxu0 %v460
        %599 = vmatpush1.bf16.msra.mxu0 %v459
        %600 = vmatprep.subr.bf16.mxu0 %v484
        %601 = vmatpush1.bf16.msra.mxu0 %v483
        %602 = vmatprep.subr.bf16.mxu0 0
        %603 = vmatpush1.bf16.msra.mxu0 0
        %604 = vmatprep.subr.bf16.mxu0 0
        %605 = vmatpush1.bf16.msra.mxu0 0
        %606 = vmatprep.subr.bf16.mxu0 0
        %607 = vmatpush1.bf16.msra.mxu0 0
        %608 = vmatprep.subr.bf16.mxu0 0
        %609 = vmatpush1.bf16.msra.mxu0 0
        %610 = vmatprep.subr.bf16.mxu0 0
        %611 = vmatpush1.bf16.msra.mxu0 0
        %612 = vmatprep.subr.bf16.mxu0 0
        %613 = vmatpush1.bf16.msra.mxu0 0
        %614 = vmatprep.subr.bf16.mxu0 0
        %615 = vmatpush1.bf16.msra.mxu0 0
        %616 = vmatprep.subr.bf16.mxu0 0
        %617 = vmatpush1.bf16.msra.mxu0 0
        %618 = vmatprep.subr.bf16.mxu0 0
        %619 = vmatpush1.bf16.msra.mxu0 0
        %620 = vmatprep.subr.bf16.mxu0 0
        %621 = vmatpush1.bf16.msra.mxu0 0
        %622 = vmatprep.subr.bf16.mxu0 0
        %623 = vmatpush1.bf16.msra.mxu0 0
        %624 = vmatprep.subr.bf16.mxu0 0
        %625 = vmatpush1.bf16.msra.mxu0 0
        %626 = vmatprep.subr.bf16.mxu0 0
        %627 = vmatpush1.bf16.msra.mxu0 0
        %628 = vmatprep.subr.bf16.mxu0 0
        %629 = vmatpush1.bf16.msra.mxu0 0
        %630 = vmatprep.mubr.bf16.mxu0 0
        %631 = vmatmul.mubr.bf16.gmra.mrb[0].mxu0 %v555
        %v632 = vpop.f32.mrb[0].mxu0
        %v633 = vadd.f32 %v311, %v632
        %v634 = vpop.f32.mrb[0].mxu0
        %v635 = vadd.f32 %v311, %v634
        %v636 = vpop.f32.mrb[0].mxu0
        %v637 = vpop.f32.mrb[0].mxu0
        %638 = vdwg.mxu0
        %639 = vmatprep.subr.bf16.mxu0 %v462
        %640 = vmatpush1.bf16.msra.mxu0 %v461
        %641 = vmatprep.subr.bf16.mxu0 %v486
        %642 = vmatpush1.bf16.msra.mxu0 %v485
        %643 = vmatprep.subr.bf16.mxu0 0
        %644 = vmatpush1.bf16.msra.mxu0 0
        %645 = vmatprep.subr.bf16.mxu0 0
        %646 = vmatpush1.bf16.msra.mxu0 0
        %647 = vmatprep.subr.bf16.mxu0 0
        %648 = vmatpush1.bf16.msra.mxu0 0
        %649 = vmatprep.subr.bf16.mxu0 0
        %650 = vmatpush1.bf16.msra.mxu0 0
        %651 = vmatprep.subr.bf16.mxu0 0
        %652 = vmatpush1.bf16.msra.mxu0 0
        %653 = vmatprep.subr.bf16.mxu0 0
        %654 = vmatpush1.bf16.msra.mxu0 0
        %655 = vmatprep.subr.bf16.mxu0 0
        %656 = vmatpush1.bf16.msra.mxu0 0
        %657 = vmatprep.subr.bf16.mxu0 0
        %658 = vmatpush1.bf16.msra.mxu0 0
        %659 = vmatprep.subr.bf16.mxu0 0
        %660 = vmatpush1.bf16.msra.mxu0 0
        %661 = vmatprep.subr.bf16.mxu0 0
        %662 = vmatpush1.bf16.msra.mxu0 0
        %663 = vmatprep.subr.bf16.mxu0 0
        %664 = vmatpush1.bf16.msra.mxu0 0
        %665 = vmatprep.subr.bf16.mxu0 0
        %666 = vmatpush1.bf16.msra.mxu0 0
        %667 = vmatprep.subr.bf16.mxu0 0
        %668 = vmatpush1.bf16.msra.mxu0 0
        %669 = vmatprep.subr.bf16.mxu0 0
        %670 = vmatpush1.bf16.msra.mxu0 0
        %671 = vmatprep.mubr.bf16.mxu0 0
        %672 = vmatmul.mubr.bf16.gmra.mrb[0].mxu0 %v555
        %v673 = vpop.f32.mrb[0].mxu0
        %v674 = vadd.f32 %v311, %v673
        %v675 = vpop.f32.mrb[0].mxu0
        %v676 = vadd.f32 %v311, %v675
        %v677 = vpop.f32.mrb[0].mxu0
        %v678 = vpop.f32.mrb[0].mxu0
        %679 = vdwg.mxu0
        %680 = vmatprep.subr.bf16.mxu0 %v464
        %681 = vmatpush1.bf16.msra.mxu0 %v463
        %682 = vmatprep.subr.bf16.mxu0 %v488
        %683 = vmatpush1.bf16.msra.mxu0 %v487
        %684 = vmatprep.subr.bf16.mxu0 0
        %685 = vmatpush1.bf16.msra.mxu0 0
        %686 = vmatprep.subr.bf16.mxu0 0
        %687 = vmatpush1.bf16.msra.mxu0 0
        %688 = vmatprep.subr.bf16.mxu0 0
        %689 = vmatpush1.bf16.msra.mxu0 0
        %690 = vmatprep.subr.bf16.mxu0 0
        %691 = vmatpush1.bf16.msra.mxu0 0
        %692 = vmatprep.subr.bf16.mxu0 0
        %693 = vmatpush1.bf16.msra.mxu0 0
        %694 = vmatprep.subr.bf16.mxu0 0
        %695 = vmatpush1.bf16.msra.mxu0 0
        %696 = vmatprep.subr.bf16.mxu0 0
        %697 = vmatpush1.bf16.msra.mxu0 0
        %698 = vmatprep.subr.bf16.mxu0 0
        %699 = vmatpush1.bf16.msra.mxu0 0
        %700 = vmatprep.subr.bf16.mxu0 0
        %701 = vmatpush1.bf16.msra.mxu0 0
        %702 = vmatprep.subr.bf16.mxu0 0
        %703 = vmatpush1.bf16.msra.mxu0 0
        %704 = vmatprep.subr.bf16.mxu0 0
        %705 = vmatpush1.bf16.msra.mxu0 0
        %706 = vmatprep.subr.bf16.mxu0 0
        %707 = vmatpush1.bf16.msra.mxu0 0
        %708 = vmatprep.subr.bf16.mxu0 0
        %709 = vmatpush1.bf16.msra.mxu0 0
        %710 = vmatprep.subr.bf16.mxu0 0
        %711 = vmatpush1.bf16.msra.mxu0 0
        %712 = vmatprep.mubr.bf16.mxu0 0
        %713 = vmatmul.mubr.bf16.gmra.mrb[0].mxu0 %v555
        %v714 = vpop.f32.mrb[0].mxu0
        %v715 = vadd.f32 %v311, %v714
        %v716 = vpop.f32.mrb[0].mxu0
        %v717 = vadd.f32 %v311, %v716
        %v718 = vpop.f32.mrb[0].mxu0
        %v719 = vpop.f32.mrb[0].mxu0
        %720 = vdwg.mxu0
        %721 = vmatprep.subr.bf16.mxu0 %v466
        %722 = vmatpush1.bf16.msra.mxu0 %v465
        %723 = vmatprep.subr.bf16.mxu0 %v490
        %724 = vmatpush1.bf16.msra.mxu0 %v489
        %725 = vmatprep.subr.bf16.mxu0 0
        %726 = vmatpush1.bf16.msra.mxu0 0
        %727 = vmatprep.subr.bf16.mxu0 0
        %728 = vmatpush1.bf16.msra.mxu0 0
        %729 = vmatprep.subr.bf16.mxu0 0
        %730 = vmatpush1.bf16.msra.mxu0 0
        %731 = vmatprep.subr.bf16.mxu0 0
        %732 = vmatpush1.bf16.msra.mxu0 0
        %733 = vmatprep.subr.bf16.mxu0 0
        %734 = vmatpush1.bf16.msra.mxu0 0
        %735 = vmatprep.subr.bf16.mxu0 0
        %736 = vmatpush1.bf16.msra.mxu0 0
        %737 = vmatprep.subr.bf16.mxu0 0
        %738 = vmatpush1.bf16.msra.mxu0 0
        %739 = vmatprep.subr.bf16.mxu0 0
        %740 = vmatpush1.bf16.msra.mxu0 0
        %741 = vmatprep.subr.bf16.mxu0 0
        %742 = vmatpush1.bf16.msra.mxu0 0
        %743 = vmatprep.subr.bf16.mxu0 0
        %744 = vmatpush1.bf16.msra.mxu0 0
        %745 = vmatprep.subr.bf16.mxu0 0
        %746 = vmatpush1.bf16.msra.mxu0 0
        %747 = vmatprep.subr.bf16.mxu0 0
        %748 = vmatpush1.bf16.msra.mxu0 0
        %749 = vmatprep.subr.bf16.mxu0 0
        %750 = vmatpush1.bf16.msra.mxu0 0
        %751 = vmatprep.subr.bf16.mxu0 0
        %752 = vmatpush1.bf16.msra.mxu0 0
        %753 = vmatprep.mubr.bf16.mxu0 0
        %754 = vmatmul.mubr.bf16.gmra.mrb[0].mxu0 %v555
        %v755 = vpop.f32.mrb[0].mxu0
        %v756 = vadd.f32 %v311, %v755
        %v757 = vpop.f32.mrb[0].mxu0
        %v758 = vadd.f32 %v311, %v757
        %v759 = vpop.f32.mrb[0].mxu0
        %v760 = vpop.f32.mrb[0].mxu0
        %761 = vdwg.mxu0
        %762 = vmatprep.subr.bf16.mxu0 %v468
        %763 = vmatpush1.bf16.msra.mxu0 %v467
        %764 = vmatprep.subr.bf16.mxu0 %v492
        %765 = vmatpush1.bf16.msra.mxu0 %v491
        %766 = vmatprep.subr.bf16.mxu0 0
        %767 = vmatpush1.bf16.msra.mxu0 0
        %768 = vmatprep.subr.bf16.mxu0 0
        %769 = vmatpush1.bf16.msra.mxu0 0
        %770 = vmatprep.subr.bf16.mxu0 0
        %771 = vmatpush1.bf16.msra.mxu0 0
        %772 = vmatprep.subr.bf16.mxu0 0
        %773 = vmatpush1.bf16.msra.mxu0 0
        %774 = vmatprep.subr.bf16.mxu0 0
        %775 = vmatpush1.bf16.msra.mxu0 0
        %776 = vmatprep.subr.bf16.mxu0 0
        %777 = vmatpush1.bf16.msra.mxu0 0
        %778 = vmatprep.subr.bf16.mxu0 0
        %779 = vmatpush1.bf16.msra.mxu0 0
        %780 = vmatprep.subr.bf16.mxu0 0
        %781 = vmatpush1.bf16.msra.mxu0 0
        %782 = vmatprep.subr.bf16.mxu0 0
        %783 = vmatpush1.bf16.msra.mxu0 0
        %784 = vmatprep.subr.bf16.mxu0 0
        %785 = vmatpush1.bf16.msra.mxu0 0
        %786 = vmatprep.subr.bf16.mxu0 0
        %787 = vmatpush1.bf16.msra.mxu0 0
        %788 = vmatprep.subr.bf16.mxu0 0
        %789 = vmatpush1.bf16.msra.mxu0 0
        %790 = vmatprep.subr.bf16.mxu0 0
        %791 = vmatpush1.bf16.msra.mxu0 0
        %792 = vmatprep.subr.bf16.mxu0 0
        %793 = vmatpush1.bf16.msra.mxu0 0
        %794 = vmatprep.mubr.bf16.mxu0 0
        %795 = vmatmul.mubr.bf16.gmra.mrb[0].mxu0 %v555
        %v796 = vpop.f32.mrb[0].mxu0
        %v797 = vadd.f32 %v311, %v796
        %v798 = vpop.f32.mrb[0].mxu0
        %v799 = vadd.f32 %v311, %v798
        %v800 = vpop.f32.mrb[0].mxu0
        %v801 = vpop.f32.mrb[0].mxu0
        %802 = vdwg.mxu0
        %803 = vmatprep.subr.bf16.mxu0 %v470
        %804 = vmatpush1.bf16.msra.mxu0 %v469
        %805 = vmatprep.subr.bf16.mxu0 %v494
        %806 = vmatpush1.bf16.msra.mxu0 %v493
        %807 = vmatprep.subr.bf16.mxu0 0
        %808 = vmatpush1.bf16.msra.mxu0 0
        %809 = vmatprep.subr.bf16.mxu0 0
        %810 = vmatpush1.bf16.msra.mxu0 0
        %811 = vmatprep.subr.bf16.mxu0 0
        %812 = vmatpush1.bf16.msra.mxu0 0
        %813 = vmatprep.subr.bf16.mxu0 0
        %814 = vmatpush1.bf16.msra.mxu0 0
        %815 = vmatprep.subr.bf16.mxu0 0
        %816 = vmatpush1.bf16.msra.mxu0 0
        %817 = vmatprep.subr.bf16.mxu0 0
        %818 = vmatpush1.bf16.msra.mxu0 0
        %819 = vmatprep.subr.bf16.mxu0 0
        %820 = vmatpush1.bf16.msra.mxu0 0
        %821 = vmatprep.subr.bf16.mxu0 0
        %822 = vmatpush1.bf16.msra.mxu0 0
        %823 = vmatprep.subr.bf16.mxu0 0
        %824 = vmatpush1.bf16.msra.mxu0 0
        %825 = vmatprep.subr.bf16.mxu0 0
        %826 = vmatpush1.bf16.msra.mxu0 0
        %827 = vmatprep.subr.bf16.mxu0 0
        %828 = vmatpush1.bf16.msra.mxu0 0
        %829 = vmatprep.subr.bf16.mxu0 0
        %830 = vmatpush1.bf16.msra.mxu0 0
        %831 = vmatprep.subr.bf16.mxu0 0
        %832 = vmatpush1.bf16.msra.mxu0 0
        %833 = vmatprep.subr.bf16.mxu0 0
        %834 = vmatpush1.bf16.msra.mxu0 0
        %835 = vmatprep.mubr.bf16.mxu0 0
        %836 = vmatmul.mubr.bf16.gmra.mrb[0].mxu0 %v555
        %v837 = vpop.f32.mrb[0].mxu0
        %v838 = vadd.f32 %v311, %v837
        %v839 = vpop.f32.mrb[0].mxu0
        %v840 = vadd.f32 %v311, %v839
        %v841 = vpop.f32.mrb[0].mxu0
        %v842 = vpop.f32.mrb[0].mxu0
        %843 = vdwg.mxu0
        %844 = vmatprep.subr.bf16.mxu0 %v472
        %845 = vmatpush1.bf16.msra.mxu0 %v471
        %846 = vmatprep.subr.bf16.mxu0 %v496
        %847 = vmatpush1.bf16.msra.mxu0 %v495
        %848 = vmatprep.subr.bf16.mxu0 0
        %849 = vmatpush1.bf16.msra.mxu0 0
        %850 = vmatprep.subr.bf16.mxu0 0
        %851 = vmatpush1.bf16.msra.mxu0 0
        %852 = vmatprep.subr.bf16.mxu0 0
        %853 = vmatpush1.bf16.msra.mxu0 0
        %854 = vmatprep.subr.bf16.mxu0 0
        %855 = vmatpush1.bf16.msra.mxu0 0
        %856 = vmatprep.subr.bf16.mxu0 0
        %857 = vmatpush1.bf16.msra.mxu0 0
        %858 = vmatprep.subr.bf16.mxu0 0
        %859 = vmatpush1.bf16.msra.mxu0 0
        %860 = vmatprep.subr.bf16.mxu0 0
        %861 = vmatpush1.bf16.msra.mxu0 0
        %862 = vmatprep.subr.bf16.mxu0 0
        %863 = vmatpush1.bf16.msra.mxu0 0
        %864 = vmatprep.subr.bf16.mxu0 0
        %865 = vmatpush1.bf16.msra.mxu0 0
        %866 = vmatprep.subr.bf16.mxu0 0
        %867 = vmatpush1.bf16.msra.mxu0 0
        %868 = vmatprep.subr.bf16.mxu0 0
        %869 = vmatpush1.bf16.msra.mxu0 0
        %870 = vmatprep.subr.bf16.mxu0 0
        %871 = vmatpush1.bf16.msra.mxu0 0
        %872 = vmatprep.subr.bf16.mxu0 0
        %873 = vmatpush1.bf16.msra.mxu0 0
        %874 = vmatprep.subr.bf16.mxu0 0
        %875 = vmatpush1.bf16.msra.mxu0 0
        %876 = vmatprep.mubr.bf16.mxu0 0
        %877 = vmatmul.mubr.bf16.gmra.mrb[0].mxu0 %v555
        %v878 = vpop.f32.mrb[0].mxu0
        %v879 = vadd.f32 %v311, %v878
        %v880 = vpop.f32.mrb[0].mxu0
        %v881 = vadd.f32 %v311, %v880
        %v882 = vpop.f32.mrb[0].mxu0
        %v883 = vpop.f32.mrb[0].mxu0
        %884 = vdwg.mxu0
        %885 = vmatprep.subr.bf16.mxu0 %v474
        %886 = vmatpush1.bf16.msra.mxu0 %v473
        %887 = vmatprep.subr.bf16.mxu0 %v498
        %888 = vmatpush1.bf16.msra.mxu0 %v497
        %889 = vmatprep.subr.bf16.mxu0 0
        %890 = vmatpush1.bf16.msra.mxu0 0
        %891 = vmatprep.subr.bf16.mxu0 0
        %892 = vmatpush1.bf16.msra.mxu0 0
        %893 = vmatprep.subr.bf16.mxu0 0
        %894 = vmatpush1.bf16.msra.mxu0 0
        %895 = vmatprep.subr.bf16.mxu0 0
        %896 = vmatpush1.bf16.msra.mxu0 0
        %897 = vmatprep.subr.bf16.mxu0 0
        %898 = vmatpush1.bf16.msra.mxu0 0
        %899 = vmatprep.subr.bf16.mxu0 0
        %900 = vmatpush1.bf16.msra.mxu0 0
        %901 = vmatprep.subr.bf16.mxu0 0
        %902 = vmatpush1.bf16.msra.mxu0 0
        %903 = vmatprep.subr.bf16.mxu0 0
        %904 = vmatpush1.bf16.msra.mxu0 0
        %905 = vmatprep.subr.bf16.mxu0 0
        %906 = vmatpush1.bf16.msra.mxu0 0
        %907 = vmatprep.subr.bf16.mxu0 0
        %908 = vmatpush1.bf16.msra.mxu0 0
        %909 = vmatprep.subr.bf16.mxu0 0
        %910 = vmatpush1.bf16.msra.mxu0 0
        %911 = vmatprep.subr.bf16.mxu0 0
        %912 = vmatpush1.bf16.msra.mxu0 0
        %913 = vmatprep.subr.bf16.mxu0 0
        %914 = vmatpush1.bf16.msra.mxu0 0
        %915 = vmatprep.subr.bf16.mxu0 0
        %916 = vmatpush1.bf16.msra.mxu0 0
        %917 = vmatprep.mubr.bf16.mxu0 0
        %918 = vmatmul.mubr.bf16.gmra.mrb[0].mxu0 %v555
        %v919 = vpop.f32.mrb[0].mxu0
        %v920 = vadd.f32 %v311, %v919
        %v921 = vpop.f32.mrb[0].mxu0
        %v922 = vadd.f32 %v311, %v921
        %v923 = vpop.f32.mrb[0].mxu0
        %v924 = vpop.f32.mrb[0].mxu0
        %925 = vdwg.mxu0
        %926 = vmatprep.subr.bf16.mxu0 %v476
        %927 = vmatpush1.bf16.msra.mxu0 %v475
        %928 = vmatprep.subr.bf16.mxu0 %v500
        %929 = vmatpush1.bf16.msra.mxu0 %v499
        %930 = vmatprep.subr.bf16.mxu0 0
        %931 = vmatpush1.bf16.msra.mxu0 0
        %932 = vmatprep.subr.bf16.mxu0 0
        %933 = vmatpush1.bf16.msra.mxu0 0
        %934 = vmatprep.subr.bf16.mxu0 0
        %935 = vmatpush1.bf16.msra.mxu0 0
        %936 = vmatprep.subr.bf16.mxu0 0
        %937 = vmatpush1.bf16.msra.mxu0 0
        %938 = vmatprep.subr.bf16.mxu0 0
        %939 = vmatpush1.bf16.msra.mxu0 0
        %940 = vmatprep.subr.bf16.mxu0 0
        %941 = vmatpush1.bf16.msra.mxu0 0
        %942 = vmatprep.subr.bf16.mxu0 0
        %943 = vmatpush1.bf16.msra.mxu0 0
        %944 = vmatprep.subr.bf16.mxu0 0
        %945 = vmatpush1.bf16.msra.mxu0 0
        %946 = vmatprep.subr.bf16.mxu0 0
        %947 = vmatpush1.bf16.msra.mxu0 0
        %948 = vmatprep.subr.bf16.mxu0 0
        %949 = vmatpush1.bf16.msra.mxu0 0
        %950 = vmatprep.subr.bf16.mxu0 0
        %951 = vmatpush1.bf16.msra.mxu0 0
        %952 = vmatprep.subr.bf16.mxu0 0
        %953 = vmatpush1.bf16.msra.mxu0 0
        %954 = vmatprep.subr.bf16.mxu0 0
        %955 = vmatpush1.bf16.msra.mxu0 0
        %956 = vmatprep.subr.bf16.mxu0 0
        %957 = vmatpush1.bf16.msra.mxu0 0
        %958 = vmatprep.mubr.bf16.mxu0 0
        %959 = vmatmul.mubr.bf16.gmra.mrb[0].mxu0 %v555
        %v960 = vpop.f32.mrb[0].mxu0
        %v961 = vadd.f32 %v311, %v960
        %v962 = vpop.f32.mrb[0].mxu0
        %v963 = vadd.f32 %v311, %v962
        %v964 = vpop.f32.mrb[0].mxu0
        %v965 = vpop.f32.mrb[0].mxu0
        %966 = vdwg.mxu0
        %967 = vmatprep.subr.bf16.mxu0 %v478
        %968 = vmatpush1.bf16.msra.mxu0 %v477
        %969 = vmatprep.subr.bf16.mxu0 %v502
        %970 = vmatpush1.bf16.msra.mxu0 %v501
        %971 = vmatprep.subr.bf16.mxu0 0
        %972 = vmatpush1.bf16.msra.mxu0 0
        %973 = vmatprep.subr.bf16.mxu0 0
        %974 = vmatpush1.bf16.msra.mxu0 0
        %975 = vmatprep.subr.bf16.mxu0 0
        %976 = vmatpush1.bf16.msra.mxu0 0
        %977 = vmatprep.subr.bf16.mxu0 0
        %978 = vmatpush1.bf16.msra.mxu0 0
        %979 = vmatprep.subr.bf16.mxu0 0
        %980 = vmatpush1.bf16.msra.mxu0 0
        %981 = vmatprep.subr.bf16.mxu0 0
        %982 = vmatpush1.bf16.msra.mxu0 0
        %983 = vmatprep.subr.bf16.mxu0 0
        %984 = vmatpush1.bf16.msra.mxu0 0
        %985 = vmatprep.subr.bf16.mxu0 0
        %986 = vmatpush1.bf16.msra.mxu0 0
        %987 = vmatprep.subr.bf16.mxu0 0
        %988 = vmatpush1.bf16.msra.mxu0 0
        %989 = vmatprep.subr.bf16.mxu0 0
        %990 = vmatpush1.bf16.msra.mxu0 0
        %991 = vmatprep.subr.bf16.mxu0 0
        %992 = vmatpush1.bf16.msra.mxu0 0
        %993 = vmatprep.subr.bf16.mxu0 0
        %994 = vmatpush1.bf16.msra.mxu0 0
        %995 = vmatprep.subr.bf16.mxu0 0
        %996 = vmatpush1.bf16.msra.mxu0 0
        %997 = vmatprep.subr.bf16.mxu0 0
        %998 = vmatpush1.bf16.msra.mxu0 0
        %999 = vmatprep.mubr.bf16.mxu0 0
        %1000 = vmatmul.mubr.bf16.gmra.mrb[0].mxu0 %v555
        %v1001 = vpop.f32.mrb[0].mxu0
        %v1002 = vadd.f32 %v311, %v1001
        %v1003 = vpop.f32.mrb[0].mxu0
        %v1004 = vadd.f32 %v311, %v1003
        %v1005 = vpop.f32.mrb[0].mxu0
        %v1006 = vpop.f32.mrb[0].mxu0
        %1007 = vdwg.mxu0
        %1008 = vmatprep.subr.bf16.mxu0 %v480
        %1009 = vmatpush1.bf16.msra.mxu0 %v479
        %1010 = vmatprep.subr.bf16.mxu0 %v504
        %1011 = vmatpush1.bf16.msra.mxu0 %v503
        %1012 = vmatprep.subr.bf16.mxu0 0
        %1013 = vmatpush1.bf16.msra.mxu0 0
        %1014 = vmatprep.subr.bf16.mxu0 0
        %1015 = vmatpush1.bf16.msra.mxu0 0
        %1016 = vmatprep.subr.bf16.mxu0 0
        %1017 = vmatpush1.bf16.msra.mxu0 0
        %1018 = vmatprep.subr.bf16.mxu0 0
        %1019 = vmatpush1.bf16.msra.mxu0 0
        %1020 = vmatprep.subr.bf16.mxu0 0
        %1021 = vmatpush1.bf16.msra.mxu0 0
        %1022 = vmatprep.subr.bf16.mxu0 0
        %1023 = vmatpush1.bf16.msra.mxu0 0
        %1024 = vmatprep.subr.bf16.mxu0 0
        %1025 = vmatpush1.bf16.msra.mxu0 0
        %1026 = vmatprep.subr.bf16.mxu0 0
        %1027 = vmatpush1.bf16.msra.mxu0 0
        %1028 = vmatprep.subr.bf16.mxu0 0
        %1029 = vmatpush1.bf16.msra.mxu0 0
        %1030 = vmatprep.subr.bf16.mxu0 0
        %1031 = vmatpush1.bf16.msra.mxu0 0
        %1032 = vmatprep.subr.bf16.mxu0 0
        %1033 = vmatpush1.bf16.msra.mxu0 0
        %1034 = vmatprep.subr.bf16.mxu0 0
        %1035 = vmatpush1.bf16.msra.mxu0 0
        %1036 = vmatprep.subr.bf16.mxu0 0
        %1037 = vmatpush1.bf16.msra.mxu0 0
        %1038 = vmatprep.subr.bf16.mxu0 0
        %1039 = vmatpush1.bf16.msra.mxu0 0
        %1040 = vmatprep.mubr.bf16.mxu0 0
        %1041 = vmatmul.mubr.bf16.gmra.mrb[0].mxu0 %v555
        %v1042 = vpop.f32.mrb[0].mxu0
        %v1043 = vadd.f32 %v311, %v1042
        %v1044 = vpop.f32.mrb[0].mxu0
        %v1045 = vadd.f32 %v311, %v1044
        %v1046 = vpop.f32.mrb[0].mxu0
        %v1047 = vpop.f32.mrb[0].mxu0
        %1048 = vdwg.mxu0
        %v1049 = vrot.slane %v592, 4
        %v1050 = vmax.f32 %v592, %v1049
        %v1051 = vrot.slane %v1050, 2
        %v1052 = vmax.f32 %v1050, %v1051
        %v1053 = vrot.slane %v1052, 1
        %v1054 = vmax.f32 %v1052, %v1053
        %v1055 = vrot.slane %v594, 4
        %v1056 = vmax.f32 %v594, %v1055
        %v1057 = vrot.slane %v1056, 2
        %v1058 = vmax.f32 %v1056, %v1057
        %v1059 = vrot.slane %v1058, 1
        %v1060 = vmax.f32 %v1058, %v1059
        %v1061 = vrot.slane %v633, 4
        %v1062 = vmax.f32 %v633, %v1061
        %v1063 = vrot.slane %v1062, 2
        %v1064 = vmax.f32 %v1062, %v1063
        %v1065 = vrot.slane %v1064, 1
        %v1066 = vmax.f32 %v1064, %v1065
        %v1067 = vrot.slane %v635, 4
        %v1068 = vmax.f32 %v635, %v1067
        %v1069 = vrot.slane %v1068, 2
        %v1070 = vmax.f32 %v1068, %v1069
        %v1071 = vrot.slane %v1070, 1
        %v1072 = vmax.f32 %v1070, %v1071
        %v1073 = vrot.slane %v674, 4
        %v1074 = vmax.f32 %v674, %v1073
        %v1075 = vrot.slane %v1074, 2
        %v1076 = vmax.f32 %v1074, %v1075
        %v1077 = vrot.slane %v1076, 1
        %v1078 = vmax.f32 %v1076, %v1077
        %v1079 = vrot.slane %v676, 4
        %v1080 = vmax.f32 %v676, %v1079
        %v1081 = vrot.slane %v1080, 2
        %v1082 = vmax.f32 %v1080, %v1081
        %v1083 = vrot.slane %v1082, 1
        %v1084 = vmax.f32 %v1082, %v1083
        %v1085 = vrot.slane %v715, 4
        %v1086 = vmax.f32 %v715, %v1085
        %v1087 = vrot.slane %v1086, 2
        %v1088 = vmax.f32 %v1086, %v1087
        %v1089 = vrot.slane %v1088, 1
        %v1090 = vmax.f32 %v1088, %v1089
        %v1091 = vrot.slane %v717, 4
        %v1092 = vmax.f32 %v717, %v1091
        %v1093 = vrot.slane %v1092, 2
        %v1094 = vmax.f32 %v1092, %v1093
        %v1095 = vrot.slane %v1094, 1
        %v1096 = vmax.f32 %v1094, %v1095
        %v1097 = vrot.slane %v756, 4
        %v1098 = vmax.f32 %v756, %v1097
        %v1099 = vrot.slane %v1098, 2
        %v1100 = vmax.f32 %v1098, %v1099
        %v1101 = vrot.slane %v1100, 1
        %v1102 = vmax.f32 %v1100, %v1101
        %v1103 = vrot.slane %v758, 4
        %v1104 = vmax.f32 %v758, %v1103
        %v1105 = vrot.slane %v1104, 2
        %v1106 = vmax.f32 %v1104, %v1105
        %v1107 = vrot.slane %v1106, 1
        %v1108 = vmax.f32 %v1106, %v1107
        %v1109 = vrot.slane %v797, 4
        %v1110 = vmax.f32 %v797, %v1109
        %v1111 = vrot.slane %v1110, 2
        %v1112 = vmax.f32 %v1110, %v1111
        %v1113 = vrot.slane %v1112, 1
        %v1114 = vmax.f32 %v1112, %v1113
        %v1115 = vrot.slane %v799, 4
        %v1116 = vmax.f32 %v799, %v1115
        %v1117 = vrot.slane %v1116, 2
        %v1118 = vmax.f32 %v1116, %v1117
        %v1119 = vrot.slane %v1118, 1
        %v1120 = vmax.f32 %v1118, %v1119
        %v1121 = vrot.slane %v838, 4
        %v1122 = vmax.f32 %v838, %v1121
        %v1123 = vrot.slane %v1122, 2
        %v1124 = vmax.f32 %v1122, %v1123
        %v1125 = vrot.slane %v1124, 1
        %v1126 = vmax.f32 %v1124, %v1125
        %v1127 = vrot.slane %v840, 4
        %v1128 = vmax.f32 %v840, %v1127
        %v1129 = vrot.slane %v1128, 2
        %v1130 = vmax.f32 %v1128, %v1129
        %v1131 = vrot.slane %v1130, 1
        %v1132 = vmax.f32 %v1130, %v1131
        %v1133 = vrot.slane %v879, 4
        %v1134 = vmax.f32 %v879, %v1133
        %v1135 = vrot.slane %v1134, 2
        %v1136 = vmax.f32 %v1134, %v1135
        %v1137 = vrot.slane %v1136, 1
        %v1138 = vmax.f32 %v1136, %v1137
        %v1139 = vrot.slane %v881, 4
        %v1140 = vmax.f32 %v881, %v1139
        %v1141 = vrot.slane %v1140, 2
        %v1142 = vmax.f32 %v1140, %v1141
        %v1143 = vrot.slane %v1142, 1
        %v1144 = vmax.f32 %v1142, %v1143
        %v1145 = vrot.slane %v920, 4
        %v1146 = vmax.f32 %v920, %v1145
        %v1147 = vrot.slane %v1146, 2
        %v1148 = vmax.f32 %v1146, %v1147
        %v1149 = vrot.slane %v1148, 1
        %v1150 = vmax.f32 %v1148, %v1149
        %v1151 = vrot.slane %v922, 4
        %v1152 = vmax.f32 %v922, %v1151
        %v1153 = vrot.slane %v1152, 2
        %v1154 = vmax.f32 %v1152, %v1153
        %v1155 = vrot.slane %v1154, 1
        %v1156 = vmax.f32 %v1154, %v1155
        %v1157 = vrot.slane %v961, 4
        %v1158 = vmax.f32 %v961, %v1157
        %v1159 = vrot.slane %v1158, 2
        %v1160 = vmax.f32 %v1158, %v1159
        %v1161 = vrot.slane %v1160, 1
        %v1162 = vmax.f32 %v1160, %v1161
        %v1163 = vrot.slane %v963, 4
        %v1164 = vmax.f32 %v963, %v1163
        %v1165 = vrot.slane %v1164, 2
        %v1166 = vmax.f32 %v1164, %v1165
        %v1167 = vrot.slane %v1166, 1
        %v1168 = vmax.f32 %v1166, %v1167
        %v1169 = vrot.slane %v1002, 4
        %v1170 = vmax.f32 %v1002, %v1169
        %v1171 = vrot.slane %v1170, 2
        %v1172 = vmax.f32 %v1170, %v1171
        %v1173 = vrot.slane %v1172, 1
        %v1174 = vmax.f32 %v1172, %v1173
        %v1175 = vrot.slane %v1004, 4
        %v1176 = vmax.f32 %v1004, %v1175
        %v1177 = vrot.slane %v1176, 2
        %v1178 = vmax.f32 %v1176, %v1177
        %v1179 = vrot.slane %v1178, 1
        %v1180 = vmax.f32 %v1178, %v1179
        %v1181 = vrot.slane %v1043, 4
        %v1182 = vmax.f32 %v1043, %v1181
        %v1183 = vrot.slane %v1182, 2
        %v1184 = vmax.f32 %v1182, %v1183
        %v1185 = vrot.slane %v1184, 1
        %v1186 = vmax.f32 %v1184, %v1185
        %v1187 = vrot.slane %v1045, 4
        %v1188 = vmax.f32 %v1045, %v1187
        %v1189 = vrot.slane %v1188, 2
        %v1190 = vmax.f32 %v1188, %v1189
        %v1191 = vrot.slane %v1190, 1
        %v1192 = vmax.f32 %v1190, %v1191
        %v1193 = vsub.f32 %v592, %v1054
        %v1194 = vsub.f32 %v594, %v1060
        %v1195 = vsub.f32 %v633, %v1066
        %v1196 = vsub.f32 %v635, %v1072
        %v1197 = vsub.f32 %v674, %v1078
        %v1198 = vsub.f32 %v676, %v1084
        %v1199 = vsub.f32 %v715, %v1090
        %v1200 = vsub.f32 %v717, %v1096
        %v1201 = vsub.f32 %v756, %v1102
        %v1202 = vsub.f32 %v758, %v1108
        %v1203 = vsub.f32 %v797, %v1114
        %v1204 = vsub.f32 %v799, %v1120
        %v1205 = vsub.f32 %v838, %v1126
        %v1206 = vsub.f32 %v840, %v1132
        %v1207 = vsub.f32 %v879, %v1138
        %v1208 = vsub.f32 %v881, %v1144
        %v1209 = vsub.f32 %v920, %v1150
        %v1210 = vsub.f32 %v922, %v1156
        %v1211 = vsub.f32 %v961, %v1162
        %v1212 = vsub.f32 %v963, %v1168
        %v1213 = vsub.f32 %v1002, %v1174
        %v1214 = vsub.f32 %v1004, %v1180
        %v1215 = vsub.f32 %v1043, %v1186
        %v1216 = vsub.f32 %v1045, %v1192
        %v1217 = vmul.f32 %v1193, 1.442695
        %v1218 = vpow.pop %v1217
        %v1219 = vmul.f32 %v1194, 1.442695
        %v1220 = vpow.pop %v1219
        %v1221 = vmul.f32 %v1195, 1.442695
        %v1222 = vpow.pop %v1221
        %v1223 = vmul.f32 %v1196, 1.442695
        %v1224 = vpow.pop %v1223
        %v1225 = vmul.f32 %v1197, 1.442695
        %v1226 = vpow.pop %v1225
        %v1227 = vmul.f32 %v1198, 1.442695
        %v1228 = vpow.pop %v1227
        %v1229 = vmul.f32 %v1199, 1.442695
        %v1230 = vpow.pop %v1229
        %v1231 = vmul.f32 %v1200, 1.442695
        %v1232 = vpow.pop %v1231
        %v1233 = vmul.f32 %v1201, 1.442695
        %v1234 = vpow.pop %v1233
        %v1235 = vmul.f32 %v1202, 1.442695
        %v1236 = vpow.pop %v1235
        %v1237 = vmul.f32 %v1203, 1.442695
        %v1238 = vpow.pop %v1237
        %v1239 = vmul.f32 %v1204, 1.442695
        %v1240 = vpow.pop %v1239
        %v1241 = vmul.f32 %v1205, 1.442695
        %v1242 = vpow.pop %v1241
        %v1243 = vmul.f32 %v1206, 1.442695
        %v1244 = vpow.pop %v1243
        %v1245 = vmul.f32 %v1207, 1.442695
        %v1246 = vpow.pop %v1245
        %v1247 = vmul.f32 %v1208, 1.442695
        %v1248 = vpow.pop %v1247
        %v1249 = vmul.f32 %v1209, 1.442695
        %v1250 = vpow.pop %v1249
        %v1251 = vmul.f32 %v1210, 1.442695
        %v1252 = vpow.pop %v1251
        %v1253 = vmul.f32 %v1211, 1.442695
        %v1254 = vpow.pop %v1253
        %v1255 = vmul.f32 %v1212, 1.442695
        %v1256 = vpow.pop %v1255
        %v1257 = vmul.f32 %v1213, 1.442695
        %v1258 = vpow.pop %v1257
        %v1259 = vmul.f32 %v1214, 1.442695
        %v1260 = vpow.pop %v1259
        %v1261 = vmul.f32 %v1215, 1.442695
        %v1262 = vpow.pop %v1261
        %v1263 = vmul.f32 %v1216, 1.442695
        %v1264 = vpow.pop %v1263
        %v1265 = vrot.slane %v1218, 4
        %v1266 = vadd.f32 %v1218, %v1265
        %v1267 = vrot.slane %v1266, 2
        %v1268 = vadd.f32 %v1266, %v1267
        %v1269 = vrot.slane %v1268, 1
        %v1270 = vadd.f32 %v1268, %v1269
        %v1271 = vrot.slane %v1220, 4
        %v1272 = vadd.f32 %v1220, %v1271
        %v1273 = vrot.slane %v1272, 2
        %v1274 = vadd.f32 %v1272, %v1273
        %v1275 = vrot.slane %v1274, 1
        %v1276 = vadd.f32 %v1274, %v1275
        %v1277 = vrot.slane %v1222, 4
        %v1278 = vadd.f32 %v1222, %v1277
        %v1279 = vrot.slane %v1278, 2
        %v1280 = vadd.f32 %v1278, %v1279
        %v1281 = vrot.slane %v1280, 1
        %v1282 = vadd.f32 %v1280, %v1281
        %v1283 = vrot.slane %v1224, 4
        %v1284 = vadd.f32 %v1224, %v1283
        %v1285 = vrot.slane %v1284, 2
        %v1286 = vadd.f32 %v1284, %v1285
        %v1287 = vrot.slane %v1286, 1
        %v1288 = vadd.f32 %v1286, %v1287
        %v1289 = vrot.slane %v1226, 4
        %v1290 = vadd.f32 %v1226, %v1289
        %v1291 = vrot.slane %v1290, 2
        %v1292 = vadd.f32 %v1290, %v1291
        %v1293 = vrot.slane %v1292, 1
        %v1294 = vadd.f32 %v1292, %v1293
        %v1295 = vrot.slane %v1228, 4
        %v1296 = vadd.f32 %v1228, %v1295
        %v1297 = vrot.slane %v1296, 2
        %v1298 = vadd.f32 %v1296, %v1297
        %v1299 = vrot.slane %v1298, 1
        %v1300 = vadd.f32 %v1298, %v1299
        %v1301 = vrot.slane %v1230, 4
        %v1302 = vadd.f32 %v1230, %v1301
        %v1303 = vrot.slane %v1302, 2
        %v1304 = vadd.f32 %v1302, %v1303
        %v1305 = vrot.slane %v1304, 1
        %v1306 = vadd.f32 %v1304, %v1305
        %v1307 = vrot.slane %v1232, 4
        %v1308 = vadd.f32 %v1232, %v1307
        %v1309 = vrot.slane %v1308, 2
        %v1310 = vadd.f32 %v1308, %v1309
        %v1311 = vrot.slane %v1310, 1
        %v1312 = vadd.f32 %v1310, %v1311
        %v1313 = vrot.slane %v1234, 4
        %v1314 = vadd.f32 %v1234, %v1313
        %v1315 = vrot.slane %v1314, 2
        %v1316 = vadd.f32 %v1314, %v1315
        %v1317 = vrot.slane %v1316, 1
        %v1318 = vadd.f32 %v1316, %v1317
        %v1319 = vrot.slane %v1236, 4
        %v1320 = vadd.f32 %v1236, %v1319
        %v1321 = vrot.slane %v1320, 2
        %v1322 = vadd.f32 %v1320, %v1321
        %v1323 = vrot.slane %v1322, 1
        %v1324 = vadd.f32 %v1322, %v1323
        %v1325 = vrot.slane %v1238, 4
        %v1326 = vadd.f32 %v1238, %v1325
        %v1327 = vrot.slane %v1326, 2
        %v1328 = vadd.f32 %v1326, %v1327
        %v1329 = vrot.slane %v1328, 1
        %v1330 = vadd.f32 %v1328, %v1329
        %v1331 = vrot.slane %v1240, 4
        %v1332 = vadd.f32 %v1240, %v1331
        %v1333 = vrot.slane %v1332, 2
        %v1334 = vadd.f32 %v1332, %v1333
        %v1335 = vrot.slane %v1334, 1
        %v1336 = vadd.f32 %v1334, %v1335
        %v1337 = vrot.slane %v1242, 4
        %v1338 = vadd.f32 %v1242, %v1337
        %v1339 = vrot.slane %v1338, 2
        %v1340 = vadd.f32 %v1338, %v1339
        %v1341 = vrot.slane %v1340, 1
        %v1342 = vadd.f32 %v1340, %v1341
        %v1343 = vrot.slane %v1244, 4
        %v1344 = vadd.f32 %v1244, %v1343
        %v1345 = vrot.slane %v1344, 2
        %v1346 = vadd.f32 %v1344, %v1345
        %v1347 = vrot.slane %v1346, 1
        %v1348 = vadd.f32 %v1346, %v1347
        %v1349 = vrot.slane %v1246, 4
        %v1350 = vadd.f32 %v1246, %v1349
        %v1351 = vrot.slane %v1350, 2
        %v1352 = vadd.f32 %v1350, %v1351
        %v1353 = vrot.slane %v1352, 1
        %v1354 = vadd.f32 %v1352, %v1353
        %v1355 = vrot.slane %v1248, 4
        %v1356 = vadd.f32 %v1248, %v1355
        %v1357 = vrot.slane %v1356, 2
        %v1358 = vadd.f32 %v1356, %v1357
        %v1359 = vrot.slane %v1358, 1
        %v1360 = vadd.f32 %v1358, %v1359
        %v1361 = vrot.slane %v1250, 4
        %v1362 = vadd.f32 %v1250, %v1361
        %v1363 = vrot.slane %v1362, 2
        %v1364 = vadd.f32 %v1362, %v1363
        %v1365 = vrot.slane %v1364, 1
        %v1366 = vadd.f32 %v1364, %v1365
        %v1367 = vrot.slane %v1252, 4
        %v1368 = vadd.f32 %v1252, %v1367
        %v1369 = vrot.slane %v1368, 2
        %v1370 = vadd.f32 %v1368, %v1369
        %v1371 = vrot.slane %v1370, 1
        %v1372 = vadd.f32 %v1370, %v1371
        %v1373 = vrot.slane %v1254, 4
        %v1374 = vadd.f32 %v1254, %v1373
        %v1375 = vrot.slane %v1374, 2
        %v1376 = vadd.f32 %v1374, %v1375
        %v1377 = vrot.slane %v1376, 1
        %v1378 = vadd.f32 %v1376, %v1377
        %v1379 = vrot.slane %v1256, 4
        %v1380 = vadd.f32 %v1256, %v1379
        %v1381 = vrot.slane %v1380, 2
        %v1382 = vadd.f32 %v1380, %v1381
        %v1383 = vrot.slane %v1382, 1
        %v1384 = vadd.f32 %v1382, %v1383
        %v1385 = vrot.slane %v1258, 4
        %v1386 = vadd.f32 %v1258, %v1385
        %v1387 = vrot.slane %v1386, 2
        %v1388 = vadd.f32 %v1386, %v1387
        %v1389 = vrot.slane %v1388, 1
        %v1390 = vadd.f32 %v1388, %v1389
        %v1391 = vrot.slane %v1260, 4
        %v1392 = vadd.f32 %v1260, %v1391
        %v1393 = vrot.slane %v1392, 2
        %v1394 = vadd.f32 %v1392, %v1393
        %v1395 = vrot.slane %v1394, 1
        %v1396 = vadd.f32 %v1394, %v1395
        %v1397 = vrot.slane %v1262, 4
        %v1398 = vadd.f32 %v1262, %v1397
        %v1399 = vrot.slane %v1398, 2
        %v1400 = vadd.f32 %v1398, %v1399
        %v1401 = vrot.slane %v1400, 1
        %v1402 = vadd.f32 %v1400, %v1401
        %v1403 = vrot.slane %v1264, 4
        %v1404 = vadd.f32 %v1264, %v1403
        %v1405 = vrot.slane %v1404, 2
        %v1406 = vadd.f32 %v1404, %v1405
        %v1407 = vrot.slane %v1406, 1
        %v1408 = vadd.f32 %v1406, %v1407
        %v1409 = vlog2.pop %v1270
        %v1410 = vmul.f32 %v1409, 0.6931472
        %v1411 = vlog2.pop %v1276
        %v1412 = vmul.f32 %v1411, 0.6931472
        %v1413 = vlog2.pop %v1282
        %v1414 = vmul.f32 %v1413, 0.6931472
        %v1415 = vlog2.pop %v1288
        %v1416 = vmul.f32 %v1415, 0.6931472
        %v1417 = vlog2.pop %v1294
        %v1418 = vmul.f32 %v1417, 0.6931472
        %v1419 = vlog2.pop %v1300
        %v1420 = vmul.f32 %v1419, 0.6931472
        %v1421 = vlog2.pop %v1306
        %v1422 = vmul.f32 %v1421, 0.6931472
        %v1423 = vlog2.pop %v1312
        %v1424 = vmul.f32 %v1423, 0.6931472
        %v1425 = vlog2.pop %v1318
        %v1426 = vmul.f32 %v1425, 0.6931472
        %v1427 = vlog2.pop %v1324
        %v1428 = vmul.f32 %v1427, 0.6931472
        %v1429 = vlog2.pop %v1330
        %v1430 = vmul.f32 %v1429, 0.6931472
        %v1431 = vlog2.pop %v1336
        %v1432 = vmul.f32 %v1431, 0.6931472
        %v1433 = vlog2.pop %v1342
        %v1434 = vmul.f32 %v1433, 0.6931472
        %v1435 = vlog2.pop %v1348
        %v1436 = vmul.f32 %v1435, 0.6931472
        %v1437 = vlog2.pop %v1354
        %v1438 = vmul.f32 %v1437, 0.6931472
        %v1439 = vlog2.pop %v1360
        %v1440 = vmul.f32 %v1439, 0.6931472
        %v1441 = vlog2.pop %v1366
        %v1442 = vmul.f32 %v1441, 0.6931472
        %v1443 = vlog2.pop %v1372
        %v1444 = vmul.f32 %v1443, 0.6931472
        %v1445 = vlog2.pop %v1378
        %v1446 = vmul.f32 %v1445, 0.6931472
        %v1447 = vlog2.pop %v1384
        %v1448 = vmul.f32 %v1447, 0.6931472
        %v1449 = vlog2.pop %v1390
        %v1450 = vmul.f32 %v1449, 0.6931472
        %v1451 = vlog2.pop %v1396
        %v1452 = vmul.f32 %v1451, 0.6931472
        %v1453 = vlog2.pop %v1402
        %v1454 = vmul.f32 %v1453, 0.6931472
        %v1455 = vlog2.pop %v1408
        %v1456 = vmul.f32 %v1455, 0.6931472
        %v1457 = vadd.f32 %v1054, %v1410
        %v1458 = vadd.f32 %v1060, %v1412
        %v1459 = vadd.f32 %v1066, %v1414
        %v1460 = vadd.f32 %v1072, %v1416
        %v1461 = vadd.f32 %v1078, %v1418
        %v1462 = vadd.f32 %v1084, %v1420
        %v1463 = vadd.f32 %v1090, %v1422
        %v1464 = vadd.f32 %v1096, %v1424
        %v1465 = vadd.f32 %v1102, %v1426
        %v1466 = vadd.f32 %v1108, %v1428
        %v1467 = vadd.f32 %v1114, %v1430
        %v1468 = vadd.f32 %v1120, %v1432
        %v1469 = vadd.f32 %v1126, %v1434
        %v1470 = vadd.f32 %v1132, %v1436
        %v1471 = vadd.f32 %v1138, %v1438
        %v1472 = vadd.f32 %v1144, %v1440
        %v1473 = vadd.f32 %v1150, %v1442
        %v1474 = vadd.f32 %v1156, %v1444
        %v1475 = vadd.f32 %v1162, %v1446
        %v1476 = vadd.f32 %v1168, %v1448
        %v1477 = vadd.f32 %v1174, %v1450
        %v1478 = vadd.f32 %v1180, %v1452
        %v1479 = vadd.f32 %v1186, %v1454
        %v1480 = vadd.f32 %v1192, %v1456
        %v1481 = vld [vmem:[%s224] sm:$0xff]
        %v1482 = vld [vmem:[%s224 + $0x8] sm:$0xff]
        %v1483 = vld [vmem:[%s224 + $0x10] sm:$0xff]
        %v1484 = vlaneseq
        %v1485 = vshrl.u32 %v1484, 7
        %v1486 = vlaneseq
        %v1487 = vshrl.u32 %v1486, 7
        %v1488 = vsub.s32 0, %v1487
        %v1489 = vrot.slane %v1481, %v1488
        %v1490 = vlaneseq
        %v1491 = vshrl.u32 %v1490, 7
        %v1492 = vsub.s32 1, %v1491
        %v1493 = vrot.slane %v1481, %v1492
        %v1494 = vlaneseq
        %v1495 = vshrl.u32 %v1494, 7
        %v1496 = vsub.s32 2, %v1495
        %v1497 = vrot.slane %v1481, %v1496
        %v1498 = vlaneseq
        %v1499 = vshrl.u32 %v1498, 7
        %v1500 = vsub.s32 3, %v1499
        %v1501 = vrot.slane %v1481, %v1500
        %v1502 = vlaneseq
        %v1503 = vshrl.u32 %v1502, 7
        %v1504 = vsub.s32 4, %v1503
        %v1505 = vrot.slane %v1481, %v1504
        %v1506 = vlaneseq
        %v1507 = vshrl.u32 %v1506, 7
        %v1508 = vsub.s32 5, %v1507
        %v1509 = vrot.slane %v1481, %v1508
        %v1510 = vlaneseq
        %v1511 = vshrl.u32 %v1510, 7
        %v1512 = vsub.s32 6, %v1511
        %v1513 = vrot.slane %v1481, %v1512
        %v1514 = vlaneseq
        %v1515 = vshrl.u32 %v1514, 7
        %v1516 = vsub.s32 7, %v1515
        %v1517 = vrot.slane %v1481, %v1516
        %v1518 = vlaneseq
        %v1519 = vshrl.u32 %v1518, 7
        %v1520 = vsub.s32 0, %v1519
        %v1521 = vrot.slane %v1482, %v1520
        %v1522 = vlaneseq
        %v1523 = vshrl.u32 %v1522, 7
        %v1524 = vsub.s32 1, %v1523
        %v1525 = vrot.slane %v1482, %v1524
        %v1526 = vlaneseq
        %v1527 = vshrl.u32 %v1526, 7
        %v1528 = vsub.s32 2, %v1527
        %v1529 = vrot.slane %v1482, %v1528
        %v1530 = vlaneseq
        %v1531 = vshrl.u32 %v1530, 7
        %v1532 = vsub.s32 3, %v1531
        %v1533 = vrot.slane %v1482, %v1532
        %v1534 = vlaneseq
        %v1535 = vshrl.u32 %v1534, 7
        %v1536 = vsub.s32 4, %v1535
        %v1537 = vrot.slane %v1482, %v1536
        %v1538 = vlaneseq
        %v1539 = vshrl.u32 %v1538, 7
        %v1540 = vsub.s32 5, %v1539
        %v1541 = vrot.slane %v1482, %v1540
        %v1542 = vlaneseq
        %v1543 = vshrl.u32 %v1542, 7
        %v1544 = vsub.s32 6, %v1543
        %v1545 = vrot.slane %v1482, %v1544
        %v1546 = vlaneseq
        %v1547 = vshrl.u32 %v1546, 7
        %v1548 = vsub.s32 7, %v1547
        %v1549 = vrot.slane %v1482, %v1548
        %v1550 = vlaneseq
        %v1551 = vshrl.u32 %v1550, 7
        %v1552 = vsub.s32 0, %v1551
        %v1553 = vrot.slane %v1483, %v1552
        %v1554 = vlaneseq
        %v1555 = vshrl.u32 %v1554, 7
        %v1556 = vsub.s32 1, %v1555
        %v1557 = vrot.slane %v1483, %v1556
        %v1558 = vlaneseq
        %v1559 = vshrl.u32 %v1558, 7
        %v1560 = vsub.s32 2, %v1559
        %v1561 = vrot.slane %v1483, %v1560
        %v1562 = vlaneseq
        %v1563 = vshrl.u32 %v1562, 7
        %v1564 = vsub.s32 3, %v1563
        %v1565 = vrot.slane %v1483, %v1564
        %v1566 = vlaneseq
        %v1567 = vshrl.u32 %v1566, 7
        %v1568 = vsub.s32 4, %v1567
        %v1569 = vrot.slane %v1483, %v1568
        %v1570 = vlaneseq
        %v1571 = vshrl.u32 %v1570, 7
        %v1572 = vsub.s32 5, %v1571
        %v1573 = vrot.slane %v1483, %v1572
        %v1574 = vlaneseq
        %v1575 = vshrl.u32 %v1574, 7
        %v1576 = vsub.s32 6, %v1575
        %v1577 = vrot.slane %v1483, %v1576
        %v1578 = vlaneseq
        %v1579 = vshrl.u32 %v1578, 7
        %v1580 = vsub.s32 7, %v1579
        %v1581 = vrot.slane %v1483, %v1580
        %vm1582 = vcmp.eq.s32.totalorder %v1485, %v1489
        %vm1583 = vcmp.eq.s32.totalorder %v1485, %v1493
        %vm1584 = vcmp.eq.s32.totalorder %v1485, %v1497
        %vm1585 = vcmp.eq.s32.totalorder %v1485, %v1501
        %vm1586 = vcmp.eq.s32.totalorder %v1485, %v1505
        %vm1587 = vcmp.eq.s32.totalorder %v1485, %v1509
        %vm1588 = vcmp.eq.s32.totalorder %v1485, %v1513
        %vm1589 = vcmp.eq.s32.totalorder %v1485, %v1517
        %vm1590 = vcmp.eq.s32.totalorder %v1485, %v1521
        %vm1591 = vcmp.eq.s32.totalorder %v1485, %v1525
        %vm1592 = vcmp.eq.s32.totalorder %v1485, %v1529
        %vm1593 = vcmp.eq.s32.totalorder %v1485, %v1533
        %vm1594 = vcmp.eq.s32.totalorder %v1485, %v1537
        %vm1595 = vcmp.eq.s32.totalorder %v1485, %v1541
        %vm1596 = vcmp.eq.s32.totalorder %v1485, %v1545
        %vm1597 = vcmp.eq.s32.totalorder %v1485, %v1549
        %vm1598 = vcmp.eq.s32.totalorder %v1485, %v1553
        %vm1599 = vcmp.eq.s32.totalorder %v1485, %v1557
        %vm1600 = vcmp.eq.s32.totalorder %v1485, %v1561
        %vm1601 = vcmp.eq.s32.totalorder %v1485, %v1565
        %vm1602 = vcmp.eq.s32.totalorder %v1485, %v1569
        %vm1603 = vcmp.eq.s32.totalorder %v1485, %v1573
        %vm1604 = vcmp.eq.s32.totalorder %v1485, %v1577
        %vm1605 = vcmp.eq.s32.totalorder %v1485, %v1581
        %v1606 = vsel %vm1582, %v592, 0.0
        %v1607 = vsel %vm1583, %v594, 0.0
        %v1608 = vsel %vm1584, %v633, 0.0
        %v1609 = vsel %vm1585, %v635, 0.0
        %v1610 = vsel %vm1586, %v674, 0.0
        %v1611 = vsel %vm1587, %v676, 0.0
        %v1612 = vsel %vm1588, %v715, 0.0
        %v1613 = vsel %vm1589, %v717, 0.0
        %v1614 = vsel %vm1590, %v756, 0.0
        %v1615 = vsel %vm1591, %v758, 0.0
        %v1616 = vsel %vm1592, %v797, 0.0
        %v1617 = vsel %vm1593, %v799, 0.0
        %v1618 = vsel %vm1594, %v838, 0.0
        %v1619 = vsel %vm1595, %v840, 0.0
        %v1620 = vsel %vm1596, %v879, 0.0
        %v1621 = vsel %vm1597, %v881, 0.0
        %v1622 = vsel %vm1598, %v920, 0.0
        %v1623 = vsel %vm1599, %v922, 0.0
        %v1624 = vsel %vm1600, %v961, 0.0
        %v1625 = vsel %vm1601, %v963, 0.0
        %v1626 = vsel %vm1602, %v1002, 0.0
        %v1627 = vsel %vm1603, %v1004, 0.0
        %v1628 = vsel %vm1604, %v1043, 0.0
        %v1629 = vsel %vm1605, %v1045, 0.0
        %v1630 = vrot.slane %v1606, 4
        %v1631 = vadd.f32 %v1606, %v1630
        %v1632 = vrot.slane %v1631, 2
        %v1633 = vadd.f32 %v1631, %v1632
        %v1634 = vrot.slane %v1633, 1
        %v1635 = vadd.f32 %v1633, %v1634
        %v1636 = vrot.slane %v1607, 4
        %v1637 = vadd.f32 %v1607, %v1636
        %v1638 = vrot.slane %v1637, 2
        %v1639 = vadd.f32 %v1637, %v1638
        %v1640 = vrot.slane %v1639, 1
        %v1641 = vadd.f32 %v1639, %v1640
        %v1642 = vrot.slane %v1608, 4
        %v1643 = vadd.f32 %v1608, %v1642
        %v1644 = vrot.slane %v1643, 2
        %v1645 = vadd.f32 %v1643, %v1644
        %v1646 = vrot.slane %v1645, 1
        %v1647 = vadd.f32 %v1645, %v1646
        %v1648 = vrot.slane %v1609, 4
        %v1649 = vadd.f32 %v1609, %v1648
        %v1650 = vrot.slane %v1649, 2
        %v1651 = vadd.f32 %v1649, %v1650
        %v1652 = vrot.slane %v1651, 1
        %v1653 = vadd.f32 %v1651, %v1652
        %v1654 = vrot.slane %v1610, 4
        %v1655 = vadd.f32 %v1610, %v1654
        %v1656 = vrot.slane %v1655, 2
        %v1657 = vadd.f32 %v1655, %v1656
        %v1658 = vrot.slane %v1657, 1
        %v1659 = vadd.f32 %v1657, %v1658
        %v1660 = vrot.slane %v1611, 4
        %v1661 = vadd.f32 %v1611, %v1660
        %v1662 = vrot.slane %v1661, 2
        %v1663 = vadd.f32 %v1661, %v1662
        %v1664 = vrot.slane %v1663, 1
        %v1665 = vadd.f32 %v1663, %v1664
        %v1666 = vrot.slane %v1612, 4
        %v1667 = vadd.f32 %v1612, %v1666
        %v1668 = vrot.slane %v1667, 2
        %v1669 = vadd.f32 %v1667, %v1668
        %v1670 = vrot.slane %v1669, 1
        %v1671 = vadd.f32 %v1669, %v1670
        %v1672 = vrot.slane %v1613, 4
        %v1673 = vadd.f32 %v1613, %v1672
        %v1674 = vrot.slane %v1673, 2
        %v1675 = vadd.f32 %v1673, %v1674
        %v1676 = vrot.slane %v1675, 1
        %v1677 = vadd.f32 %v1675, %v1676
        %v1678 = vrot.slane %v1614, 4
        %v1679 = vadd.f32 %v1614, %v1678
        %v1680 = vrot.slane %v1679, 2
        %v1681 = vadd.f32 %v1679, %v1680
        %v1682 = vrot.slane %v1681, 1
        %v1683 = vadd.f32 %v1681, %v1682
        %v1684 = vrot.slane %v1615, 4
        %v1685 = vadd.f32 %v1615, %v1684
        %v1686 = vrot.slane %v1685, 2
        %v1687 = vadd.f32 %v1685, %v1686
        %v1688 = vrot.slane %v1687, 1
        %v1689 = vadd.f32 %v1687, %v1688
        %v1690 = vrot.slane %v1616, 4
        %v1691 = vadd.f32 %v1616, %v1690
        %v1692 = vrot.slane %v1691, 2
        %v1693 = vadd.f32 %v1691, %v1692
        %v1694 = vrot.slane %v1693, 1
        %v1695 = vadd.f32 %v1693, %v1694
        %v1696 = vrot.slane %v1617, 4
        %v1697 = vadd.f32 %v1617, %v1696
        %v1698 = vrot.slane %v1697, 2
        %v1699 = vadd.f32 %v1697, %v1698
        %v1700 = vrot.slane %v1699, 1
        %v1701 = vadd.f32 %v1699, %v1700
        %v1702 = vrot.slane %v1618, 4
        %v1703 = vadd.f32 %v1618, %v1702
        %v1704 = vrot.slane %v1703, 2
        %v1705 = vadd.f32 %v1703, %v1704
        %v1706 = vrot.slane %v1705, 1
        %v1707 = vadd.f32 %v1705, %v1706
        %v1708 = vrot.slane %v1619, 4
        %v1709 = vadd.f32 %v1619, %v1708
        %v1710 = vrot.slane %v1709, 2
        %v1711 = vadd.f32 %v1709, %v1710
        %v1712 = vrot.slane %v1711, 1
        %v1713 = vadd.f32 %v1711, %v1712
        %v1714 = vrot.slane %v1620, 4
        %v1715 = vadd.f32 %v1620, %v1714
        %v1716 = vrot.slane %v1715, 2
        %v1717 = vadd.f32 %v1715, %v1716
        %v1718 = vrot.slane %v1717, 1
        %v1719 = vadd.f32 %v1717, %v1718
        %v1720 = vrot.slane %v1621, 4
        %v1721 = vadd.f32 %v1621, %v1720
        %v1722 = vrot.slane %v1721, 2
        %v1723 = vadd.f32 %v1721, %v1722
        %v1724 = vrot.slane %v1723, 1
        %v1725 = vadd.f32 %v1723, %v1724
        %v1726 = vrot.slane %v1622, 4
        %v1727 = vadd.f32 %v1622, %v1726
        %v1728 = vrot.slane %v1727, 2
        %v1729 = vadd.f32 %v1727, %v1728
        %v1730 = vrot.slane %v1729, 1
        %v1731 = vadd.f32 %v1729, %v1730
        %v1732 = vrot.slane %v1623, 4
        %v1733 = vadd.f32 %v1623, %v1732
        %v1734 = vrot.slane %v1733, 2
        %v1735 = vadd.f32 %v1733, %v1734
        %v1736 = vrot.slane %v1735, 1
        %v1737 = vadd.f32 %v1735, %v1736
        %v1738 = vrot.slane %v1624, 4
        %v1739 = vadd.f32 %v1624, %v1738
        %v1740 = vrot.slane %v1739, 2
        %v1741 = vadd.f32 %v1739, %v1740
        %v1742 = vrot.slane %v1741, 1
        %v1743 = vadd.f32 %v1741, %v1742
        %v1744 = vrot.slane %v1625, 4
        %v1745 = vadd.f32 %v1625, %v1744
        %v1746 = vrot.slane %v1745, 2
        %v1747 = vadd.f32 %v1745, %v1746
        %v1748 = vrot.slane %v1747, 1
        %v1749 = vadd.f32 %v1747, %v1748
        %v1750 = vrot.slane %v1626, 4
        %v1751 = vadd.f32 %v1626, %v1750
        %v1752 = vrot.slane %v1751, 2
        %v1753 = vadd.f32 %v1751, %v1752
        %v1754 = vrot.slane %v1753, 1
        %v1755 = vadd.f32 %v1753, %v1754
        %v1756 = vrot.slane %v1627, 4
        %v1757 = vadd.f32 %v1627, %v1756
        %v1758 = vrot.slane %v1757, 2
        %v1759 = vadd.f32 %v1757, %v1758
        %v1760 = vrot.slane %v1759, 1
        %v1761 = vadd.f32 %v1759, %v1760
        %v1762 = vrot.slane %v1628, 4
        %v1763 = vadd.f32 %v1628, %v1762
        %v1764 = vrot.slane %v1763, 2
        %v1765 = vadd.f32 %v1763, %v1764
        %v1766 = vrot.slane %v1765, 1
        %v1767 = vadd.f32 %v1765, %v1766
        %v1768 = vrot.slane %v1629, 4
        %v1769 = vadd.f32 %v1629, %v1768
        %v1770 = vrot.slane %v1769, 2
        %v1771 = vadd.f32 %v1769, %v1770
        %v1772 = vrot.slane %v1771, 1
        %v1773 = vadd.f32 %v1771, %v1772
        %vm1774 = vcmp.ge.s32.totalorder %v1481, 0
        %vm1775 = vcmp.ge.s32.totalorder %v1482, 0
        %vm1776 = vcmp.ge.s32.totalorder %v1483, 0
        %v1777 = vsub.f32 %v1635, %v1457
        %v1778 = vsub.f32 %v1641, %v1458
        %v1779 = vsub.f32 %v1647, %v1459
        %v1780 = vsub.f32 %v1653, %v1460
        %v1781 = vsub.f32 %v1659, %v1461
        %v1782 = vsub.f32 %v1665, %v1462
        %v1783 = vsub.f32 %v1671, %v1463
        %v1784 = vsub.f32 %v1677, %v1464
        %v1785 = vsub.f32 %v1683, %v1465
        %v1786 = vsub.f32 %v1689, %v1466
        %v1787 = vsub.f32 %v1695, %v1467
        %v1788 = vsub.f32 %v1701, %v1468
        %v1789 = vsub.f32 %v1707, %v1469
        %v1790 = vsub.f32 %v1713, %v1470
        %v1791 = vsub.f32 %v1719, %v1471
        %v1792 = vsub.f32 %v1725, %v1472
        %v1793 = vsub.f32 %v1731, %v1473
        %v1794 = vsub.f32 %v1737, %v1474
        %v1795 = vsub.f32 %v1743, %v1475
        %v1796 = vsub.f32 %v1749, %v1476
        %v1797 = vsub.f32 %v1755, %v1477
        %v1798 = vsub.f32 %v1761, %v1478
        %v1799 = vsub.f32 %v1767, %v1479
        %v1800 = vsub.f32 %v1773, %v1480
        %v1825 = vcombine.low %v1777, %v1778
        %v1826 = vcombine.low %v1779, %v1780
        %v1827 = vcombine.low %v1781, %v1782
        %v1828 = vcombine.low %v1783, %v1784
        %v1830 = vunpack.c.l.s4 1966171168
        %v1831 = vunpack.c.0.s8 %v1830
        %v1832 = vlaneseq
        %v1833 = vshrl.u32 %v1832, 7
        %v1834 = vsub.s32 %v1831, %v1833
        %v1835 = vrot.slane %v1825, %v1834
        %v1837 = vunpack.c.l.s4 1966171168
        %v1838 = vunpack.c.0.s8 %v1837
        %v1839 = vlaneseq
        %v1840 = vshrl.u32 %v1839, 7
        %v1841 = vsub.s32 %v1838, %v1840
        %v1842 = vrot.slane %v1826, %v1841
        %v1844 = vunpack.c.l.s4 1966171168
        %v1845 = vunpack.c.0.s8 %v1844
        %v1846 = vlaneseq
        %v1847 = vshrl.u32 %v1846, 7
        %v1848 = vsub.s32 %v1845, %v1847
        %v1849 = vrot.slane %v1827, %v1848
        %v1851 = vunpack.c.l.s4 1966171168
        %v1852 = vunpack.c.0.s8 %v1851
        %v1853 = vlaneseq
        %v1854 = vshrl.u32 %v1853, 7
        %v1855 = vsub.s32 %v1852, %v1854
        %v1856 = vrot.slane %v1828, %v1855
        %v1857 = vcombine.low %v1835, %v1842
        %v1858 = vcombine.low %v1849, %v1856
        %v1860 = vunpack.c.l.s4 1966171168
        %v1861 = vunpack.c.0.s8 %v1860
        %v1862 = vlaneseq
        %v1863 = vshrl.u32 %v1862, 7
        %v1864 = vsub.s32 %v1861, %v1863
        %v1865 = vrot.slane %v1857, %v1864
        %v1867 = vunpack.c.l.s4 1966171168
        %v1868 = vunpack.c.0.s8 %v1867
        %v1869 = vlaneseq
        %v1870 = vshrl.u32 %v1869, 7
        %v1871 = vsub.s32 %v1868, %v1870
        %v1872 = vrot.slane %v1858, %v1871
        %v1873 = vcombine.low %v1865, %v1872
        %v1874 = vcombine.low %v1785, %v1786
        %v1875 = vcombine.low %v1787, %v1788
        %v1876 = vcombine.low %v1789, %v1790
        %v1877 = vcombine.low %v1791, %v1792
        %v1879 = vunpack.c.l.s4 1966171168
        %v1880 = vunpack.c.0.s8 %v1879
        %v1881 = vlaneseq
        %v1882 = vshrl.u32 %v1881, 7
        %v1883 = vsub.s32 %v1880, %v1882
        %v1884 = vrot.slane %v1874, %v1883
        %v1886 = vunpack.c.l.s4 1966171168
        %v1887 = vunpack.c.0.s8 %v1886
        %v1888 = vlaneseq
        %v1889 = vshrl.u32 %v1888, 7
        %v1890 = vsub.s32 %v1887, %v1889
        %v1891 = vrot.slane %v1875, %v1890
        %v1893 = vunpack.c.l.s4 1966171168
        %v1894 = vunpack.c.0.s8 %v1893
        %v1895 = vlaneseq
        %v1896 = vshrl.u32 %v1895, 7
        %v1897 = vsub.s32 %v1894, %v1896
        %v1898 = vrot.slane %v1876, %v1897
        %v1900 = vunpack.c.l.s4 1966171168
        %v1901 = vunpack.c.0.s8 %v1900
        %v1902 = vlaneseq
        %v1903 = vshrl.u32 %v1902, 7
        %v1904 = vsub.s32 %v1901, %v1903
        %v1905 = vrot.slane %v1877, %v1904
        %v1906 = vcombine.low %v1884, %v1891
        %v1907 = vcombine.low %v1898, %v1905
        %v1909 = vunpack.c.l.s4 1966171168
        %v1910 = vunpack.c.0.s8 %v1909
        %v1911 = vlaneseq
        %v1912 = vshrl.u32 %v1911, 7
        %v1913 = vsub.s32 %v1910, %v1912
        %v1914 = vrot.slane %v1906, %v1913
        %v1916 = vunpack.c.l.s4 1966171168
        %v1917 = vunpack.c.0.s8 %v1916
        %v1918 = vlaneseq
        %v1919 = vshrl.u32 %v1918, 7
        %v1920 = vsub.s32 %v1917, %v1919
        %v1921 = vrot.slane %v1907, %v1920
        %v1922 = vcombine.low %v1914, %v1921
        %v1923 = vcombine.low %v1793, %v1794
        %v1924 = vcombine.low %v1795, %v1796
        %v1925 = vcombine.low %v1797, %v1798
        %v1926 = vcombine.low %v1799, %v1800
        %v1928 = vunpack.c.l.s4 1966171168
        %v1929 = vunpack.c.0.s8 %v1928
        %v1930 = vlaneseq
        %v1931 = vshrl.u32 %v1930, 7
        %v1932 = vsub.s32 %v1929, %v1931
        %v1933 = vrot.slane %v1923, %v1932
        %v1935 = vunpack.c.l.s4 1966171168
        %v1936 = vunpack.c.0.s8 %v1935
        %v1937 = vlaneseq
        %v1938 = vshrl.u32 %v1937, 7
        %v1939 = vsub.s32 %v1936, %v1938
        %v1940 = vrot.slane %v1924, %v1939
        %v1942 = vunpack.c.l.s4 1966171168
        %v1943 = vunpack.c.0.s8 %v1942
        %v1944 = vlaneseq
        %v1945 = vshrl.u32 %v1944, 7
        %v1946 = vsub.s32 %v1943, %v1945
        %v1947 = vrot.slane %v1925, %v1946
        %v1949 = vunpack.c.l.s4 1966171168
        %v1950 = vunpack.c.0.s8 %v1949
        %v1951 = vlaneseq
        %v1952 = vshrl.u32 %v1951, 7
        %v1953 = vsub.s32 %v1950, %v1952
        %v1954 = vrot.slane %v1926, %v1953
        %v1955 = vcombine.low %v1933, %v1940
        %v1956 = vcombine.low %v1947, %v1954
        %v1958 = vunpack.c.l.s4 1966171168
        %v1959 = vunpack.c.0.s8 %v1958
        %v1960 = vlaneseq
        %v1961 = vshrl.u32 %v1960, 7
        %v1962 = vsub.s32 %v1959, %v1961
        %v1963 = vrot.slane %v1955, %v1962
        %v1965 = vunpack.c.l.s4 1966171168
        %v1966 = vunpack.c.0.s8 %v1965
        %v1967 = vlaneseq
        %v1968 = vshrl.u32 %v1967, 7
        %v1969 = vsub.s32 %v1966, %v1968
        %v1970 = vrot.slane %v1956, %v1969
        %v1971 = vcombine.low %v1963, %v1970
        %v1975 = vsel %vm1774, %v1873, 0.0
        %v1976 = vsel %vm1775, %v1922, 0.0
        %v1977 = vsel %vm1776, %v1971, 0.0
        %1978 = vst [vmem:[%s253] sm:$0xff] %v1975
        %1979 = vst [vmem:[%s253 + $0x8] sm:$0xff] %v1976
        %1980 = vst [vmem:[%s253 + $0x10] sm:$0xff] %v1977
        %s1981 = sand.u32 %s126, 1
        %s1982 = scalar_lea.sflag [#allocation4], %s1981
        %s1983 = sand.u32 %s126, 1
        %s1984 = smul.addr %s1983, 24
        %s1985 = scalar_lea.vmem [#allocation7], %s1984
        // Predicated region
        $region45: #{tpu_custom_call.1} parent=35 // pred_check
          %p1986 = pneg %p136
        $region46: #{tpu_custom_call.1} parent=35 // pred_check_branch
          %1988 = sbr.rel (%p1986) target = $region48
        $region47: #{tpu_custom_call.1} parent=35 // pred_region
          %s1989 = smul.u32 24, %s24
          %s1991 = ssub.s32 384, 384
          %1992 = vsyncadd %s1982, %s1991
          %s1993 = smul.addr %s1989, 16
          %s1994 = scalar_lea.hbm %s4, %s1993
          %s1996 = sshll.u32 %s1985, 4
          %s1997 = int_to_ptr.vmem [resolvable:$true] %s1996
          %1999 = dma.vmem_to_hbm [thread:$0]  %s1997, 384, %s1994, %s1982
        $region48: #{tpu_custom_call.1} parent=35 // pred_fallthru
          _
      $region36: #{tpu_custom_call.1} parent=5 // pred_fallthru
        _
      %p2000 = scmp.le.s32.totalorder 2, %s19
      // Predicated region
      $region49: #{tpu_custom_call.1} parent=5 // pred_check
        %p2001 = pneg %p2000
      $region50: #{tpu_custom_call.1} parent=5 // pred_check_branch
        %2003 = sbr.rel (%p2001) target = $region52
      $region51: #{tpu_custom_call.1} parent=5 // pred_region
        %s2004 = ssub.s32 %s19, 2
        // Predicated region
        $region53: #{tpu_custom_call.1} parent=51 // pred_check
          %p2005 = pneg %p142
        $region54: #{tpu_custom_call.1} parent=51 // pred_check_branch
          %2007 = sbr.rel (%p2005) target = $region56
        $region55: #{tpu_custom_call.1} parent=51 // pred_region
          %s2008 = sand.u32 %s127, 1
          %s2009 = scalar_lea.sflag [#allocation4], %s2008
          %s2010 = sand.u32 %s127, 1
          %s2011 = smul.addr %s2010, 24
          %s2012 = scalar_lea.vmem [#allocation7], %s2011
          %2013 = dma.done %s2009, 384
        $region56: #{tpu_custom_call.1} parent=51 // pred_fallthru
          _
      $region52: #{tpu_custom_call.1} parent=5 // pred_fallthru
        _
    $region6: #{tpu_custom_call.1} parent=1 // loop_footer
      %s23 = sadd.s32 1, %s19
    $region7: #{tpu_custom_call.1} parent=1 // loop_footer_branch
      %18 = sbr.rel target = $region3
    $region8: #{tpu_custom_call.1} parent=1 // loop_exit
      _
    %2014 = vsyncpa [#allocation3], 1
    %s2015 = scalar_lea.sflag [#allocation3], 1
    %2016 = vsyncpa %s2015, 1
    %2017 = vsyncpa [#allocation6], 1
    %s2018 = scalar_lea.sflag [#allocation6], 1
    %2019 = vsyncpa %s2018, 1
    %2020 = vsyncpa [#allocation4], 1
    %s2021 = scalar_lea.sflag [#allocation4], 1
    %2022 = vsyncpa %s2021, 1

</llo_original>
